<compile_context>
chip_gen: v7x
topology: tpu7x:2x2x1
jax: 0.10.0
libtpu: 0.0.40
codegen_flags: <defaults>
</compile_context>

<pallas_src>
import math
import jax
import jax.numpy as jnp
from jax.experimental import pallas as pl
from jax.experimental.pallas import tpu as pltpu

ALPHA0, ALPHA1 = 0.0, 1.0      # SAGEConv default alphas=[0, 1] (folded at trace time)
LN_EPS = 1e-5
BN_EPS = 1e-5
NEG_BIG = -1e30                # bias for padded logit lanes -> exp() underflows to 0


# ----------------------------------------------------------------------------- kernel
def scgraph_fused_kernel(x_ref, wg_ref, wc1_ref, wc2_ref, wf1_ref, wf2_ref,
                         wf3_ref, c_ref, out_ref):
    """Whole forward pass for one block of batch rows (row layout).

    x_ref:   (Bb, N*Cin)      bf16
    w*_ref:  folded operators bf16
    c_ref:   (8, CW)          f32  -- packed biases / LN affine rows
    out_ref: (Bb, 2*CP)       f32  -- [probs | logits], CP = Cout padded to 128 lanes
    """
    ncmid = wg_ref.shape[1]
    ng1 = wc1_ref.shape[1]
    ng2 = wc2_ref.shape[1]
    nfc1 = wf1_ref.shape[1]
    nfc2 = wf2_ref.shape[1]
    cp = wf3_ref.shape[1]

    x = x_ref[...]                                                     # (Bb, N*Cin) bf16

    # SAGEConv: mean aggregation + weight (+ optional self path) fused into wg.
    h = jnp.dot(x, wg_ref[...], preferred_element_type=jnp.float32) + c_ref[0:1, :ncmid]
    h = jnp.maximum(h, 0.0)                                            # ReLU
    # LayerNorm over (num_nodes, mid_channel) jointly == per-row normalization (f32).
    mu = jnp.mean(h, axis=-1, keepdims=True)
    var = jnp.mean(jnp.square(h - mu), axis=-1, keepdims=True)
    h = (h - mu) * jax.lax.rsqrt(var + LN_EPS)
    h = h * c_ref[1:2, :ncmid] + c_ref[2:3, :ncmid]

    # 1x1 conv1 (block-diagonal operator) + ReLU.   (global_bn1 folded into wc2.)
    z1 = jnp.dot(h.astype(jnp.bfloat16), wc1_ref[...],
                 preferred_element_type=jnp.float32) + c_ref[3:4, :ng1]
    z1 = jnp.maximum(z1, 0.0)
    # 1x1 conv2 (bn1 folded) + ReLU.                (global_bn2 folded into wf1.)
    z2 = jnp.dot(z1.astype(jnp.bfloat16), wc2_ref[...],
                 preferred_element_type=jnp.float32) + c_ref[4:5, :ng2]
    z2 = jnp.maximum(z2, 0.0)

    # FC head: flatten permutation + global_bn2 + fc-BN1 folded into wf1; fc-BN2 into wf2.
    f1 = jnp.dot(z2.astype(jnp.bfloat16), wf1_ref[...],
                 preferred_element_type=jnp.float32) + c_ref[5:6, :nfc1]
    f1 = jnp.maximum(f1, 0.0)
    f2 = jnp.dot(f1.astype(jnp.bfloat16), wf2_ref[...],
                 preferred_element_type=jnp.float32) + c_ref[6:7, :nfc2]
    f2 = jnp.maximum(f2, 0.0)
    # Padded logit lanes get bias -1e30 -> contribute exp()=0 to the softmax.
    logits = jnp.dot(f2.astype(jnp.bfloat16), wf3_ref[...],
                     preferred_element_type=jnp.float32) + c_ref[7:8, :cp]

    m = jnp.max(logits, axis=-1, keepdims=True)
    e = jnp.exp(logits - m)
    inv = pl.reciprocal(jnp.sum(e, axis=-1, keepdims=True), approx=True)   # EUP, not divide
    out_ref[:, :cp] = e * inv                                          # lane-dense store
    out_ref[:, cp:] = logits                                           # lane-dense store


# ----------------------------------------------------------------------------- glue
def bn_affine(gamma, beta, rm, rv, eps=BN_EPS):
    scale = gamma / jnp.sqrt(rv + eps)
    return scale, beta - rm * scale


def build_mean_adjacency(edge_index, edge_weight_param, num_nodes):
    """scatter(ew * x[row], col, reduce='mean') as a dense matrix A_mean @ x."""
    ew = jax.nn.sigmoid(edge_weight_param)
    row, col = edge_index[0], edge_index[1]
    A = jnp.zeros((num_nodes, num_nodes), jnp.float32).at[col, row].add(ew)
    cnt = jnp.zeros((num_nodes,), jnp.float32).at[col].add(1.0)
    return A / jnp.maximum(cnt, 1.0)[:, None]


def _round_up(v, m):
    return ((v + m - 1) // m) * m


def _fold_operators(p, A_mean, N):
    """Fold BN affines, SAGE alphas and the flatten permutation into dense row-layout
    operators (all trace-time / XLA-side work, none of it runs inside the kernel)."""
    Cin, Cmid = p['sage_w'].shape
    G1 = p['conv1_w'].shape[0]
    G2 = p['conv2_w'].shape[0]
    FC1 = p['fc1_w'].shape[0]
    FC2 = p['fc2_w'].shape[0]
    Cout = p['fc3_w'].shape[0]
    CP = _round_up(Cout, 128)                                          # lane-dense logits
    eyeN = jnp.eye(N, dtype=jnp.float32)

    # --- stage 1: SAGEConv as one (N*Cin, N*Cmid) operator on row layout ---
    wg = ALPHA1 * jnp.kron(A_mean.T, p['sage_w'])
    if ALPHA0 != 0.0:                       # self path is dead for default alphas=[0, 1]
        wg = wg + ALPHA0 * jnp.kron(eyeN, p['sage_self_w'])
    bg = ALPHA1 * jnp.tile(p['sage_b'], N)                             # (N*Cmid,)

    # --- stage 2: 1x1 convs as block-diagonal operators, BN(eval) affines folded forward ---
    s1, t1 = bn_affine(p['gbn1_gamma'], p['gbn1_beta'], p['gbn1_rm'], p['gbn1_rv'])
    s2, t2 = bn_affine(p['gbn2_gamma'], p['gbn2_beta'], p['gbn2_rm'], p['gbn2_rv'])
    wc1 = jnp.kron(eyeN, p['conv1_w'].T)                               # (N*Cmid, N*G1)
    bc1 = jnp.tile(p['conv1_b'], N)
    wc2 = jnp.kron(eyeN, s1[:, None] * p['conv2_w'].T)                 # (N*G1, N*G2), gbn1 scale
    bc2 = jnp.tile(p['conv2_b'] + t1 @ p['conv2_w'].T, N)              # gbn1 shift folded

    # --- stage 3: FC head; flatten perm (g*N+n -> n*G2+g), gbn2 and fc BNs folded ---
    sf1, tf1 = bn_affine(p['fbn1_gamma'], p['fbn1_beta'], p['fbn1_rm'], p['fbn1_rv'])
    sf2, tf2 = bn_affine(p['fbn2_gamma'], p['fbn2_beta'], p['fbn2_rm'], p['fbn2_rv'])
    w1p = p['fc1_w'].reshape(FC1, G2, N).transpose(0, 2, 1).reshape(FC1, N * G2)
    s2r, t2r = jnp.tile(s2, N), jnp.tile(t2, N)
    wf1 = ((w1p * s2r[None, :]) * sf1[:, None]).T                      # (N*G2, FC1)
    bf1 = (p['fc1_b'] + w1p @ t2r) * sf1 + tf1
    wf2 = (p['fc2_w'] * sf2[:, None]).T                                # (FC1, FC2)
    bf2 = p['fc2_b'] * sf2 + tf2
    # fc3 padded to CP output lanes; padded lanes get zero weight and a -1e30 bias.
    wf3 = jnp.zeros((FC2, CP), jnp.float32).at[:, :Cout].set(p['fc3_w'].T)
    bf3 = jnp.full((CP,), NEG_BIG, jnp.float32).at[:Cout].set(p['fc3_b'])

    # Pack every 1-row constant into a single (8, CW) f32 VMEM tile (one DMA).
    cw = max(N * Cmid, N * G1, N * G2, FC1, FC2, CP)
    cw = _round_up(cw, 128)
    pad = lambda v: jnp.zeros((cw,), jnp.float32).at[:v.shape[0]].set(v)
    consts = jnp.stack([pad(bg), pad(jnp.ravel(p['ln_w'])), pad(jnp.ravel(p['ln_b'])),
                        pad(bc1), pad(bc2), pad(bf1), pad(bf2), pad(bf3)])

    # Weight operators travel in bf16 (halves HBM/VMEM bytes; f32 MXU accumulation).
    to_bf16 = lambda a: a.astype(jnp.bfloat16)
    return (to_bf16(wg), to_bf16(wc1), to_bf16(wc2),
            to_bf16(wf1), to_bf16(wf2), to_bf16(wf3), consts, CP)


def scgraph_forward(p, x_nbc, edge_index):
    N, B, Cin = x_nbc.shape
    Cout = p['fc3_w'].shape[0]

    A_mean = build_mean_adjacency(edge_index, p['edge_weight'], N)
    wg, wc1, wc2, wf1, wf2, wf3, consts, CP = _fold_operators(p, A_mean, N)

    # Per-sample rows with (node-major, channel-minor) columns; pad batch to a full
    # f32 sublane group so every matmul LHS is sublane-dense.
    x_row = jnp.transpose(x_nbc, (1, 0, 2)).reshape(B, N * Cin)
    Bp = _round_up(B, 8)
    x_pad = jnp.pad(x_row, ((0, Bp - B), (0, 0))).astype(jnp.bfloat16)

    # Single block unless a block would carry >= 128 rows (then shard for megacore).
    if Bp >= 256 and Bp % 256 == 0:
        Bb = 256
    elif Bp >= 128 and Bp % 128 == 0:
        Bb = 128
    else:
        Bb = Bp
    nb = Bp // Bb

    full2d = lambda a: pl.BlockSpec(a.shape, lambda b: (0, 0))
    weights = (wg, wc1, wc2, wf1, wf2, wf3)
    flops = 2 * Bp * sum(w.shape[0] * w.shape[1] for w in weights)
    bytes_accessed = (2 * (x_pad.size + sum(w.size for w in weights))
                      + 4 * (consts.size + Bp * 2 * CP))

    out = pl.pallas_call(
        scgraph_fused_kernel,
        out_shape=jax.ShapeDtypeStruct((Bp, 2 * CP), jnp.float32),
        grid=(nb,),
        in_specs=[
            pl.BlockSpec((Bb, N * Cin), lambda b: (b, 0)),
            full2d(wg), full2d(wc1), full2d(wc2),
            full2d(wf1), full2d(wf2), full2d(wf3), full2d(consts),
        ],
        out_specs=pl.BlockSpec((Bb, 2 * CP), lambda b: (b, 0)),
        compiler_params=pltpu.CompilerParams(
            dimension_semantics=("parallel",),
            vmem_limit_bytes=16 * 1024 * 1024),
        cost_estimate=pl.CostEstimate(flops=flops, transcendentals=Bp * (CP + 1),
                                      bytes_accessed=bytes_accessed),
    )(x_pad, wg, wc1, wc2, wf1, wf2, wf3, consts)

    probs = out[:B, :Cout]
    logits = out[:B, CP:CP + Cout]
    return probs, logits


# ----------------------------------------------------------------------------- reference (plain JAX)
def reference_forward(p, x_nbc, edge_index):
    N, B, Cin = x_nbc.shape
    G2 = p['conv2_w'].shape[0]
    A_mean = build_mean_adjacency(edge_index, p['edge_weight'], N)
    aggr = jnp.einsum('nm,mbc->nbc', A_mean, x_nbc)
    out_self = jnp.einsum('nbc,cd->nbd', x_nbc, p['sage_self_w'])
    out_agg = jnp.einsum('nbc,cd->nbd', aggr, p['sage_w']) + p['sage_b']
    h = jax.nn.relu(ALPHA0 * out_self + ALPHA1 * out_agg)              # (N, B, Cmid)
    hb = jnp.transpose(h, (1, 0, 2))                                   # (B, N, Cmid)
    mu = hb.mean(axis=(1, 2), keepdims=True)
    var = ((hb - mu) ** 2).mean(axis=(1, 2), keepdims=True)
    hb = (hb - mu) / jnp.sqrt(var + LN_EPS) * p['ln_w'] + p['ln_b']

    s1, t1 = bn_affine(p['gbn1_gamma'], p['gbn1_beta'], p['gbn1_rm'], p['gbn1_rv'])
    s2, t2 = bn_affine(p['gbn2_gamma'], p['gbn2_beta'], p['gbn2_rm'], p['gbn2_rv'])
    z1 = jnp.einsum('bnc,oc->bno', hb, p['conv1_w']) + p['conv1_b']
    z1 = jax.nn.relu(z1) * s1 + t1
    z2 = jnp.einsum('bno,po->bnp', z1, p['conv2_w']) + p['conv2_b']
    z2 = jax.nn.relu(z2) * s2 + t2
    flat = jnp.transpose(z2, (0, 2, 1)).reshape(B, G2 * N)

    sf1, tf1 = bn_affine(p['fbn1_gamma'], p['fbn1_beta'], p['fbn1_rm'], p['fbn1_rv'])
    sf2, tf2 = bn_affine(p['fbn2_gamma'], p['fbn2_beta'], p['fbn2_rm'], p['fbn2_rv'])
    f1 = jax.nn.relu((flat @ p['fc1_w'].T + p['fc1_b']) * sf1 + tf1)
    f2 = jax.nn.relu((f1 @ p['fc2_w'].T + p['fc2_b']) * sf2 + tf2)
    logits = f2 @ p['fc3_w'].T + p['fc3_b']
    return jax.nn.softmax(logits, axis=-1), logits


# ----------------------------------------------------------------------------- params
def init_params(key, Cin, Cmid, Cout, N, E, G1, G2, FC1, FC2):
    ks = jax.random.split(key, 10)
    unif = lambda k, shape, b: jax.random.uniform(k, shape, jnp.float32, -b, b)
    p = {}
    p['edge_weight'] = jnp.ones((E,), jnp.float32) * 0.01
    bnd = 1.0 / math.sqrt(Cin)
    p['sage_w'] = unif(ks[0], (Cin, Cmid), bnd)
    p['sage_self_w'] = unif(ks[1], (Cin, Cmid), bnd)
    p['sage_b'] = unif(ks[2], (Cmid,), bnd)
    p['ln_w'] = jnp.ones((N, Cmid), jnp.float32)
    p['ln_b'] = jnp.zeros((N, Cmid), jnp.float32)
    p['conv1_w'] = jax.random.normal(ks[3], (G1, Cmid), jnp.float32) * math.sqrt(2.0 / G1)
    p['conv1_b'] = unif(ks[4], (G1,), 1.0 / math.sqrt(Cmid))
    p['conv2_w'] = jax.random.normal(ks[5], (G2, G1), jnp.float32) * math.sqrt(2.0 / G2)
    p['conv2_b'] = unif(ks[6], (G2,), 1.0 / math.sqrt(G1))
    for name, C in (('gbn1', G1), ('gbn2', G2), ('fbn1', FC1), ('fbn2', FC2)):
        p[name + '_gamma'] = jnp.ones((C,), jnp.float32)
        p[name + '_beta'] = jnp.zeros((C,), jnp.float32)
        p[name + '_rm'] = jnp.zeros((C,), jnp.float32)
        p[name + '_rv'] = jnp.ones((C,), jnp.float32)
    def xavier(k, fout, fin):
        b = math.sqrt(6.0 / (fin + fout))
        return jax.random.uniform(k, (fout, fin), jnp.float32, -b, b)
    p['fc1_w'] = xavier(ks[7], FC1, G2 * N); p['fc1_b'] = jnp.full((FC1,), 0.01, jnp.float32)
    p['fc2_w'] = xavier(ks[8], FC2, FC1);    p['fc2_b'] = jnp.full((FC2,), 0.01, jnp.float32)
    p['fc3_w'] = xavier(ks[9], Cout, FC2);   p['fc3_b'] = jnp.full((Cout,), 0.01, jnp.float32)
    return p


# ----------------------------------------------------------------------------- main
if __name__ == "__main__":
    N, B, Cin, Cmid, Cout = 16, 4, 8, 32, 5
    E, G1, G2, FC1, FC2 = 48, 16, 8, 64, 32

    key = jax.random.PRNGKey(0)
    kx, ke, kp = jax.random.split(key, 3)
    x = jax.random.normal(kx, (N, B, Cin), jnp.float32)        # data.x: (num_nodes, batch, in_channel)
    edge_index = jax.random.randint(ke, (2, E), 0, N, jnp.int32)
    params = init_params(kp, Cin, Cmid, Cout, N, E, G1, G2, FC1, FC2)

    probs, logits = jax.jit(scgraph_forward)(params, x, edge_index)
    jax.block_until_ready((probs, logits))

    with jax.default_matmul_precision("highest"):
        ref_probs, ref_logits = reference_forward(params, x, edge_index)

    assert probs.shape == (B, Cout) and logits.shape == (B, Cout)
    # Weights/activations ride the MXU in bf16 (f32 accumulation) -> looser tolerance
    # than the pure-f32 version; probs additionally go through the EUP approx reciprocal.
    assert jnp.allclose(logits, ref_logits, atol=5e-2, rtol=5e-2)
    assert jnp.allclose(probs, ref_probs, atol=2e-2, rtol=2e-2)
    assert jnp.allclose(jnp.sum(probs, axis=-1), 1.0, atol=5e-3)
    print("KERNEL_OK")
</pallas_src>

<mosaic_0001>
module attributes {stable_mosaic.version = 11 : i64} {
  func.func private @main(%arg0: i32) attributes {dimension_semantics = [#tpu.dimension_semantics<core_parallel>], iteration_bounds = array<i64: 2>, tpu.core_type = #tpu.core_type<sc_scalar_subcore>, window_params = []} {
    return
  }
}

module attributes {stable_mosaic.version = 11 : i64} {
  func.func private @main(%arg0: i32) attributes {dimension_semantics = [#tpu.dimension_semantics<core_parallel>], iteration_bounds = array<i64: 2>, tpu.core_type = #tpu.core_type<sc_scalar_subcore>, window_params = []} {
    return
  }
}

module attributes {stable_mosaic.version = 11 : i64} {
  func.func @scgraph_fused_kernel(%arg0: i32, %arg1: memref<8x128xbf16, #tpu.memory_space<vmem>>, %arg2: memref<128x512xbf16, #tpu.memory_space<vmem>>, %arg3: memref<512x256xbf16, #tpu.memory_space<vmem>>, %arg4: memref<256x128xbf16, #tpu.memory_space<vmem>>, %arg5: memref<128x64xbf16, #tpu.memory_space<vmem>>, %arg6: memref<64x32xbf16, #tpu.memory_space<vmem>>, %arg7: memref<32x128xbf16, #tpu.memory_space<vmem>>, %arg8: memref<8x512xf32, #tpu.memory_space<vmem>>, %arg9: memref<8x256xf32, #tpu.memory_space<vmem>>) attributes {dimension_semantics = [#tpu.dimension_semantics<parallel>], iteration_bounds = array<i64: 1>, scalar_prefetch = 0 : i64, scratch_operands = 0 : i64, tpu.core_type = #tpu.core_type<tc>, window_params = [{transform_indices = @transform_0, window_bounds = array<i64: 8, 128>}, {pipeline_mode = #tpu.pipeline_mode<synchronous>, transform_indices = @transform_1, window_bounds = array<i64: 128, 512>}, {pipeline_mode = #tpu.pipeline_mode<synchronous>, transform_indices = @transform_2, window_bounds = array<i64: 512, 256>}, {pipeline_mode = #tpu.pipeline_mode<synchronous>, transform_indices = @transform_3, window_bounds = array<i64: 256, 128>}, {pipeline_mode = #tpu.pipeline_mode<synchronous>, transform_indices = @transform_4, window_bounds = array<i64: 128, 64>}, {pipeline_mode = #tpu.pipeline_mode<synchronous>, transform_indices = @transform_5, window_bounds = array<i64: 64, 32>}, {pipeline_mode = #tpu.pipeline_mode<synchronous>, transform_indices = @transform_6, window_bounds = array<i64: 32, 128>}, {pipeline_mode = #tpu.pipeline_mode<synchronous>, transform_indices = @transform_7, window_bounds = array<i64: 8, 512>}, {transform_indices = @transform_8, window_bounds = array<i64: 8, 256>}]} {
    %c0 = arith.constant 0 : index
    %c0_0 = arith.constant 0 : index
    %0 = vector.load %arg1[%c0, %c0_0] : memref<8x128xbf16, #tpu.memory_space<vmem>>, vector<8x128xbf16>
    %c0_1 = arith.constant 0 : index
    %c0_2 = arith.constant 0 : index
    %1 = vector.load %arg2[%c0_1, %c0_2] : memref<128x512xbf16, #tpu.memory_space<vmem>>, vector<128x512xbf16>
    %cst = arith.constant dense<0.000000e+00> : vector<8x512xf32>
    %2 = tpu.matmul %0, %1, %cst {dimension_numbers = #tpu.dot_dimension_numbers<[1], [0], [0], [1], [0, 0, 1, 1], [], []>} : vector<8x128xbf16>, vector<128x512xbf16>, vector<8x512xf32> -> vector<8x512xf32>
    %c0_3 = arith.constant 0 : index
    %c0_4 = arith.constant 0 : index
    %3 = vector.load %arg8[%c0_3, %c0_4] : memref<8x512xf32, #tpu.memory_space<vmem>>, vector<1x512xf32>
    %4 = vector.broadcast %3 : vector<1x512xf32> to vector<8x512xf32>
    %5 = arith.addf %2, %4 : vector<8x512xf32>
    %cst_5 = arith.constant 0.000000e+00 : f32
    %6 = vector.broadcast %cst_5 : f32 to vector<8x512xf32>
    %7 = arith.maximumf %5, %6 : vector<8x512xf32>
    %cst_6 = arith.constant dense<0.000000e+00> : vector<8xf32>
    %8 = vector.multi_reduction <add>, %7, %cst_6 [1] : vector<8x512xf32> to vector<8xf32>
    %9 = vector.shape_cast %8 : vector<8xf32> to vector<8x1xf32>
    %cst_7 = arith.constant 5.120000e+02 : f32
    %10 = vector.broadcast %cst_7 : f32 to vector<8x1xf32>
    %11 = arith.divf %9, %10 : vector<8x1xf32>
    %12 = vector.broadcast %11 : vector<8x1xf32> to vector<8x512xf32>
    %13 = arith.subf %7, %12 : vector<8x512xf32>
    %14 = arith.mulf %13, %13 : vector<8x512xf32>
    %cst_8 = arith.constant dense<0.000000e+00> : vector<8xf32>
    %15 = vector.multi_reduction <add>, %14, %cst_8 [1] : vector<8x512xf32> to vector<8xf32>
    %16 = vector.shape_cast %15 : vector<8xf32> to vector<8x1xf32>
    %cst_9 = arith.constant 5.120000e+02 : f32
    %17 = vector.broadcast %cst_9 : f32 to vector<8x1xf32>
    %18 = arith.divf %16, %17 : vector<8x1xf32>
    %19 = vector.broadcast %11 : vector<8x1xf32> to vector<8x512xf32>
    %20 = arith.subf %7, %19 : vector<8x512xf32>
    %cst_10 = arith.constant 9.99999974E-6 : f32
    %21 = vector.broadcast %cst_10 : f32 to vector<8x1xf32>
    %22 = arith.addf %18, %21 : vector<8x1xf32>
    %23 = math.rsqrt %22 : vector<8x1xf32>
    %24 = vector.broadcast %23 : vector<8x1xf32> to vector<8x512xf32>
    %25 = arith.mulf %20, %24 : vector<8x512xf32>
    %c1 = arith.constant 1 : index
    %c0_11 = arith.constant 0 : index
    %26 = vector.load %arg8[%c1, %c0_11] : memref<8x512xf32, #tpu.memory_space<vmem>>, vector<1x512xf32>
    %27 = vector.broadcast %26 : vector<1x512xf32> to vector<8x512xf32>
    %28 = arith.mulf %25, %27 : vector<8x512xf32>
    %c2 = arith.constant 2 : index
    %c0_12 = arith.constant 0 : index
    %29 = vector.load %arg8[%c2, %c0_12] : memref<8x512xf32, #tpu.memory_space<vmem>>, vector<1x512xf32>
    %30 = vector.broadcast %29 : vector<1x512xf32> to vector<8x512xf32>
    %31 = arith.addf %28, %30 : vector<8x512xf32>
    %32 = arith.truncf %31 : vector<8x512xf32> to vector<8x512xbf16>
    %c0_13 = arith.constant 0 : index
    %c0_14 = arith.constant 0 : index
    %33 = vector.load %arg3[%c0_13, %c0_14] : memref<512x256xbf16, #tpu.memory_space<vmem>>, vector<512x256xbf16>
    %cst_15 = arith.constant dense<0.000000e+00> : vector<8x256xf32>
    %34 = tpu.matmul %32, %33, %cst_15 {dimension_numbers = #tpu.dot_dimension_numbers<[1], [0], [0], [1], [0, 0, 1, 1], [], []>} : vector<8x512xbf16>, vector<512x256xbf16>, vector<8x256xf32> -> vector<8x256xf32>
    %c3 = arith.constant 3 : index
    %c0_16 = arith.constant 0 : index
    %35 = vector.load %arg8[%c3, %c0_16] : memref<8x512xf32, #tpu.memory_space<vmem>>, vector<1x256xf32>
    %36 = vector.broadcast %35 : vector<1x256xf32> to vector<8x256xf32>
    %37 = arith.addf %34, %36 : vector<8x256xf32>
    %cst_17 = arith.constant 0.000000e+00 : f32
    %38 = vector.broadcast %cst_17 : f32 to vector<8x256xf32>
    %39 = arith.maximumf %37, %38 : vector<8x256xf32>
    %40 = arith.truncf %39 : vector<8x256xf32> to vector<8x256xbf16>
    %c0_18 = arith.constant 0 : index
    %c0_19 = arith.constant 0 : index
    %41 = vector.load %arg4[%c0_18, %c0_19] : memref<256x128xbf16, #tpu.memory_space<vmem>>, vector<256x128xbf16>
    %cst_20 = arith.constant dense<0.000000e+00> : vector<8x128xf32>
    %42 = tpu.matmul %40, %41, %cst_20 {dimension_numbers = #tpu.dot_dimension_numbers<[1], [0], [0], [1], [0, 0, 1, 1], [], []>} : vector<8x256xbf16>, vector<256x128xbf16>, vector<8x128xf32> -> vector<8x128xf32>
    %c4 = arith.constant 4 : index
    %c0_21 = arith.constant 0 : index
    %43 = vector.load %arg8[%c4, %c0_21] : memref<8x512xf32, #tpu.memory_space<vmem>>, vector<1x128xf32>
    %44 = vector.broadcast %43 : vector<1x128xf32> to vector<8x128xf32>
    %45 = arith.addf %42, %44 : vector<8x128xf32>
    %cst_22 = arith.constant 0.000000e+00 : f32
    %46 = vector.broadcast %cst_22 : f32 to vector<8x128xf32>
    %47 = arith.maximumf %45, %46 : vector<8x128xf32>
    %48 = arith.truncf %47 : vector<8x128xf32> to vector<8x128xbf16>
    %c0_23 = arith.constant 0 : index
    %c0_24 = arith.constant 0 : index
    %49 = vector.load %arg5[%c0_23, %c0_24] : memref<128x64xbf16, #tpu.memory_space<vmem>>, vector<128x64xbf16>
    %cst_25 = arith.constant dense<0.000000e+00> : vector<8x64xf32>
    %50 = tpu.matmul %48, %49, %cst_25 {dimension_numbers = #tpu.dot_dimension_numbers<[1], [0], [0], [1], [0, 0, 1, 1], [], []>} : vector<8x128xbf16>, vector<128x64xbf16>, vector<8x64xf32> -> vector<8x64xf32>
    %c5 = arith.constant 5 : index
    %c0_26 = arith.constant 0 : index
    %51 = vector.load %arg8[%c5, %c0_26] : memref<8x512xf32, #tpu.memory_space<vmem>>, vector<1x64xf32>
    %52 = vector.broadcast %51 : vector<1x64xf32> to vector<8x64xf32>
    %53 = arith.addf %50, %52 : vector<8x64xf32>
    %cst_27 = arith.constant 0.000000e+00 : f32
    %54 = vector.broadcast %cst_27 : f32 to vector<8x64xf32>
    %55 = arith.maximumf %53, %54 : vector<8x64xf32>
    %56 = arith.truncf %55 : vector<8x64xf32> to vector<8x64xbf16>
    %c0_28 = arith.constant 0 : index
    %c0_29 = arith.constant 0 : index
    %57 = vector.load %arg6[%c0_28, %c0_29] : memref<64x32xbf16, #tpu.memory_space<vmem>>, vector<64x32xbf16>
    %cst_30 = arith.constant dense<0.000000e+00> : vector<8x32xf32>
    %58 = tpu.matmul %56, %57, %cst_30 {dimension_numbers = #tpu.dot_dimension_numbers<[1], [0], [0], [1], [0, 0, 1, 1], [], []>} : vector<8x64xbf16>, vector<64x32xbf16>, vector<8x32xf32> -> vector<8x32xf32>
    %c6 = arith.constant 6 : index
    %c0_31 = arith.constant 0 : index
    %59 = vector.load %arg8[%c6, %c0_31] : memref<8x512xf32, #tpu.memory_space<vmem>>, vector<1x32xf32>
    %60 = vector.broadcast %59 : vector<1x32xf32> to vector<8x32xf32>
    %61 = arith.addf %58, %60 : vector<8x32xf32>
    %cst_32 = arith.constant 0.000000e+00 : f32
    %62 = vector.broadcast %cst_32 : f32 to vector<8x32xf32>
    %63 = arith.maximumf %61, %62 : vector<8x32xf32>
    %64 = arith.truncf %63 : vector<8x32xf32> to vector<8x32xbf16>
    %c0_33 = arith.constant 0 : index
    %c0_34 = arith.constant 0 : index
    %65 = vector.load %arg7[%c0_33, %c0_34] : memref<32x128xbf16, #tpu.memory_space<vmem>>, vector<32x128xbf16>
    %cst_35 = arith.constant dense<0.000000e+00> : vector<8x128xf32>
    %66 = tpu.matmul %64, %65, %cst_35 {dimension_numbers = #tpu.dot_dimension_numbers<[1], [0], [0], [1], [0, 0, 1, 1], [], []>} : vector<8x32xbf16>, vector<32x128xbf16>, vector<8x128xf32> -> vector<8x128xf32>
    %c7 = arith.constant 7 : index
    %c0_36 = arith.constant 0 : index
    %67 = vector.load %arg8[%c7, %c0_36] : memref<8x512xf32, #tpu.memory_space<vmem>>, vector<1x128xf32>
    %68 = vector.broadcast %67 : vector<1x128xf32> to vector<8x128xf32>
    %69 = arith.addf %66, %68 : vector<8x128xf32>
    %cst_37 = arith.constant dense<0xFF800000> : vector<8xf32>
    %70 = vector.multi_reduction <maximumf>, %69, %cst_37 [1] : vector<8x128xf32> to vector<8xf32>
    %71 = vector.shape_cast %70 : vector<8xf32> to vector<8x1xf32>
    %72 = vector.broadcast %71 : vector<8x1xf32> to vector<8x128xf32>
    %73 = arith.subf %69, %72 : vector<8x128xf32>
    %74 = math.exp %73 : vector<8x128xf32>
    %cst_38 = arith.constant dense<0.000000e+00> : vector<8xf32>
    %75 = vector.multi_reduction <add>, %74, %cst_38 [1] : vector<8x128xf32> to vector<8xf32>
    %76 = vector.shape_cast %75 : vector<8xf32> to vector<8x1xf32>
    %77 = tpu.reciprocal %76 {approx = true} : vector<8x1xf32> -> vector<8x1xf32>
    %78 = vector.broadcast %77 : vector<8x1xf32> to vector<8x128xf32>
    %79 = arith.mulf %74, %78 : vector<8x128xf32>
    %c0_39 = arith.constant 0 : index
    %c0_40 = arith.constant 0 : index
    %80 = vector.load %arg9[%c0_39, %c0_40] : memref<8x256xf32, #tpu.memory_space<vmem>>, vector<8x128xf32>
    tpu.vector_store %arg9[%c0_39, %c0_40], %79 {strides = array<i32>} : memref<8x256xf32, #tpu.memory_space<vmem>>, vector<8x128xf32>,
    %c0_41 = arith.constant 0 : index
    %c128 = arith.constant 128 : index
    %81 = vector.load %arg9[%c0_41, %c128] : memref<8x256xf32, #tpu.memory_space<vmem>>, vector<8x128xf32>
    tpu.vector_store %arg9[%c0_41, %c128], %69 {strides = array<i32>} : memref<8x256xf32, #tpu.memory_space<vmem>>, vector<8x128xf32>,
    return
  }
  func.func @transform_0(%arg0: i32) -> (i32, i32) {
    %c0_i32 = arith.constant 0 : i32
    %c0_i32_0 = arith.constant 0 : i32
    return %arg0, %c0_i32 : i32, i32
  }
  func.func @transform_1(%arg0: i32) -> (i32, i32) {
    %c0_i32 = arith.constant 0 : i32
    %c0_i32_0 = arith.constant 0 : i32
    %c0_i32_1 = arith.constant 0 : i32
    return %c0_i32, %c0_i32_0 : i32, i32
  }
  func.func @transform_2(%arg0: i32) -> (i32, i32) {
    %c0_i32 = arith.constant 0 : i32
    %c0_i32_0 = arith.constant 0 : i32
    %c0_i32_1 = arith.constant 0 : i32
    return %c0_i32, %c0_i32_0 : i32, i32
  }
  func.func @transform_3(%arg0: i32) -> (i32, i32) {
    %c0_i32 = arith.constant 0 : i32
    %c0_i32_0 = arith.constant 0 : i32
    %c0_i32_1 = arith.constant 0 : i32
    return %c0_i32, %c0_i32_0 : i32, i32
  }
  func.func @transform_4(%arg0: i32) -> (i32, i32) {
    %c0_i32 = arith.constant 0 : i32
    %c0_i32_0 = arith.constant 0 : i32
    %c0_i32_1 = arith.constant 0 : i32
    return %c0_i32, %c0_i32_0 : i32, i32
  }
  func.func @transform_5(%arg0: i32) -> (i32, i32) {
    %c0_i32 = arith.constant 0 : i32
    %c0_i32_0 = arith.constant 0 : i32
    %c0_i32_1 = arith.constant 0 : i32
    return %c0_i32, %c0_i32_0 : i32, i32
  }
  func.func @transform_6(%arg0: i32) -> (i32, i32) {
    %c0_i32 = arith.constant 0 : i32
    %c0_i32_0 = arith.constant 0 : i32
    %c0_i32_1 = arith.constant 0 : i32
    return %c0_i32, %c0_i32_0 : i32, i32
  }
  func.func @transform_7(%arg0: i32) -> (i32, i32) {
    %c0_i32 = arith.constant 0 : i32
    %c0_i32_0 = arith.constant 0 : i32
    %c0_i32_1 = arith.constant 0 : i32
    return %c0_i32, %c0_i32_0 : i32, i32
  }
  func.func @transform_8(%arg0: i32) -> (i32, i32) {
    %c0_i32 = arith.constant 0 : i32
    %c0_i32_0 = arith.constant 0 : i32
    return %arg0, %c0_i32 : i32, i32
  }
}

</mosaic_0001>

<llo_original>
// kernel: tile.43
$region0: #{tile.43}
  #allocation0 [shape = 's32[1]{0}', space=sflag, size = 0x4, scoped, tag = 'scoped memory for tile.43']
  %s0 = inlined_call_operand.vmem [shape: f32[8], index: 0, kind: input, shape index: {}]
  %s1 = inlined_call_operand.vmem [shape: f32[16,8], index: 1, kind: output, shape index: {}]
  // Predicated region
  $region2: #{tile.43} parent=0 // pred_check
    _
  $region3: #{tile.43} parent=0 // pred_check_branch
    %3 = sbr.rel (0) target = $region5
  $region4: #{tile.43} parent=0 // pred_region
    _
  $region5: #{tile.43} parent=0 // pred_fallthru
    _
  %v4 = vld [vmem:[%s0] ss:$0 sm:$0xff]
  %5 = vst [vmem:[%s1] sm:$0xff] %v4
  %s6 = scalar_lea.vmem %s1, 8
  %7 = vst [vmem:[%s6] sm:$0xff] %v4

// kernel: mul.73
$region0: #{mul.73}
  %s0 = inlined_call_operand.vmem [shape: f32[16,8], index: 0, kind: input, shape index: {}]
  %s1 = inlined_call_operand.vmem [shape: f32[128], index: 1, kind: output, shape index: {}]
  $region1: #{mul.73} parent=0
    #allocation0 [shape = 'u8[4096]{0}', space=vmem, size = 0x1000, scoped, tag = 'scoped mem for output reshape']
    %v2 = vld [vmem:[%s0] sm:$0x1]
    %vm3 = vcmask 64512
    %4 = vst.msk [vmem:[#allocation0] sm:$0x1] %vm3, %v2
    %s5 = scalar_lea.vmem %s0, 15
    %v6 = vld [vmem:[%s5] sm:$0x1]
    %7 = vrot.lane.b32.xlu0 %v6, 120
    %v8 = vpop.permute.xlu0 %7
    %vm9 = vcmask 1048512
    %10 = vst.msk [vmem:[#allocation0] sm:$0x1] %vm9, %v8
    %s11 = scalar_lea.vmem %s0, 14
    %v12 = vld [vmem:[%s11] sm:$0x1]
    %13 = vrot.lane.b32.xlu0 %v12, 112
    %v14 = vpop.permute.xlu0 %13
    %vm15 = vcmask 982912
    %16 = vst.msk [vmem:[#allocation0] sm:$0x1] %vm15, %v14
    %s17 = scalar_lea.vmem %s0, 13
    %v18 = vld [vmem:[%s17] sm:$0x1]
    %19 = vrot.lane.b32.xlu0 %v18, 104
    %v20 = vpop.permute.xlu0 %19
    %vm21 = vcmask 917312
    %22 = vst.msk [vmem:[#allocation0] sm:$0x1] %vm21, %v20
    %s23 = scalar_lea.vmem %s0, 12
    %v24 = vld [vmem:[%s23] sm:$0x1]
    %25 = vrot.lane.b32.xlu0 %v24, 96
    %v26 = vpop.permute.xlu0 %25
    %vm27 = vcmask 851712
    %28 = vst.msk [vmem:[#allocation0] sm:$0x1] %vm27, %v26
    %s29 = scalar_lea.vmem %s0, 11
    %v30 = vld [vmem:[%s29] sm:$0x1]
    %31 = vrot.lane.b32.xlu0 %v30, 88
    %v32 = vpop.permute.xlu0 %31
    %vm33 = vcmask 786112
    %34 = vst.msk [vmem:[#allocation0] sm:$0x1] %vm33, %v32
    %s35 = scalar_lea.vmem %s0, 10
    %v36 = vld [vmem:[%s35] sm:$0x1]
    %37 = vrot.lane.b32.xlu0 %v36, 80
    %v38 = vpop.permute.xlu0 %37
    %vm39 = vcmask 720512
    %40 = vst.msk [vmem:[#allocation0] sm:$0x1] %vm39, %v38
    %s41 = scalar_lea.vmem %s0, 9
    %v42 = vld [vmem:[%s41] sm:$0x1]
    %43 = vrot.lane.b32.xlu0 %v42, 72
    %v44 = vpop.permute.xlu0 %43
    %vm45 = vcmask 654912
    %46 = vst.msk [vmem:[#allocation0] sm:$0x1] %vm45, %v44
    %s47 = scalar_lea.vmem %s0, 8
    %v48 = vld [vmem:[%s47] sm:$0x1]
    %49 = vrot.lane.b32.xlu0 %v48, 64
    %v50 = vpop.permute.xlu0 %49
    %vm51 = vcmask 589312
    %52 = vst.msk [vmem:[#allocation0] sm:$0x1] %vm51, %v50
    %s53 = scalar_lea.vmem %s0, 7
    %v54 = vld [vmem:[%s53] sm:$0x1]
    %55 = vrot.lane.b32.xlu0 %v54, 56
    %v56 = vpop.permute.xlu0 %55
    %vm57 = vcmask 523712
    %58 = vst.msk [vmem:[#allocation0] sm:$0x1] %vm57, %v56
    %s59 = scalar_lea.vmem %s0, 6
    %v60 = vld [vmem:[%s59] sm:$0x1]
    %61 = vrot.lane.b32.xlu0 %v60, 48
    %v62 = vpop.permute.xlu0 %61
    %vm63 = vcmask 458112
    %64 = vst.msk [vmem:[#allocation0] sm:$0x1] %vm63, %v62
    %s65 = scalar_lea.vmem %s0, 5
    %v66 = vld [vmem:[%s65] sm:$0x1]
    %67 = vrot.lane.b32.xlu0 %v66, 40
    %v68 = vpop.permute.xlu0 %67
    %vm69 = vcmask 392512
    %70 = vst.msk [vmem:[#allocation0] sm:$0x1] %vm69, %v68
    %s71 = scalar_lea.vmem %s0, 4
    %v72 = vld [vmem:[%s71] sm:$0x1]
    %73 = vrot.lane.b32.xlu0 %v72, 32
    %v74 = vpop.permute.xlu0 %73
    %vm75 = vcmask 326912
    %76 = vst.msk [vmem:[#allocation0] sm:$0x1] %vm75, %v74
    %s77 = scalar_lea.vmem %s0, 3
    %v78 = vld [vmem:[%s77] sm:$0x1]
    %79 = vrot.lane.b32.xlu0 %v78, 24
    %v80 = vpop.permute.xlu0 %79
    %vm81 = vcmask 261312
    %82 = vst.msk [vmem:[#allocation0] sm:$0x1] %vm81, %v80
    %s83 = scalar_lea.vmem %s0, 2
    %v84 = vld [vmem:[%s83] sm:$0x1]
    %85 = vrot.lane.b32.xlu0 %v84, 16
    %v86 = vpop.permute.xlu0 %85
    %vm87 = vcmask 195712
    %88 = vst.msk [vmem:[#allocation0] sm:$0x1] %vm87, %v86
    %s89 = scalar_lea.vmem %s0, 1
    %v90 = vld [vmem:[%s89] sm:$0x1]
    %91 = vrot.lane.b32.xlu0 %v90, 8
    %v92 = vpop.permute.xlu0 %91
    %vm93 = vcmask 130112
    %94 = vst.msk [vmem:[#allocation0] sm:$0x1] %vm93, %v92
    %s96 = sshllo.u32 0, 1
    %v98 = vld [vmem:[#allocation0] sm:%s96]
    %s99 = sshllo.u32 0, 1
    %100 = vst [vmem:[%s1] sm:%s99] %v98

// kernel: tile.28
$region0: #{tile.28}
  #allocation0 [shape = 's32[1]{0}', space=sflag, size = 0x4, scoped, tag = 'scoped memory for tile.28']
  %s0 = inlined_call_operand.vmem [shape: f32[32], index: 0, kind: input, shape index: {}]
  %s1 = inlined_call_operand.vmem [shape: f32[16,32], index: 1, kind: output, shape index: {}]
  // Predicated region
  $region2: #{tile.28} parent=0 // pred_check
    _
  $region3: #{tile.28} parent=0 // pred_check_branch
    %3 = sbr.rel (0) target = $region5
  $region4: #{tile.28} parent=0 // pred_region
    _
  $region5: #{tile.28} parent=0 // pred_fallthru
    _
  %v4 = vld [vmem:[%s0] ss:$0 sm:$0xff]
  %5 = vst [vmem:[%s1] sm:$0xff] %v4
  %s6 = scalar_lea.vmem %s1, 8
  %7 = vst [vmem:[%s6] sm:$0xff] %v4

// kernel: tile.33
$region0: #{tile.33}
  #allocation0 [shape = 's32[1]{0}', space=sflag, size = 0x4, scoped, tag = 'scoped memory for tile.33']
  %s0 = inlined_call_operand.vmem [shape: f32[16], index: 0, kind: input, shape index: {}]
  %s1 = inlined_call_operand.vmem [shape: f32[16,16], index: 1, kind: output, shape index: {}]
  // Predicated region
  $region2: #{tile.33} parent=0 // pred_check
    _
  $region3: #{tile.33} parent=0 // pred_check_branch
    %3 = sbr.rel (0) target = $region5
  $region4: #{tile.33} parent=0 // pred_region
    _
  $region5: #{tile.33} parent=0 // pred_fallthru
    _
  %v4 = vld [vmem:[%s0] ss:$0 sm:$0xff]
  %5 = vst [vmem:[%s1] sm:$0xff] %v4
  %s6 = scalar_lea.vmem %s1, 8
  %7 = vst [vmem:[%s6] sm:$0xff] %v4

// kernel: scgraph_forward.1
$region0: #{scgraph_forward.1}
  #allocation0 [shape = 'u32[]', space=smem, size = 0x4, offset = 0x4, fixed_abs, tag = 'smem constant byte address 0x4 - core index']
  #allocation1 [shape = 'u32[144,128]{1,0:T(1,128)}', space=vmem, size = 0x12000, scoped, tag = 'internal scratch']
  %s0 = inlined_call_operand.vmem [shape: bf16[8,128], index: 0, kind: input, shape index: {}]
  %s1 = inlined_call_operand.vmem [shape: bf16[128,512], index: 1, kind: input, shape index: {}]
  %s2 = inlined_call_operand.vmem [shape: bf16[512,256], index: 2, kind: input, shape index: {}]
  %s3 = inlined_call_operand.vmem [shape: bf16[256,128], index: 3, kind: input, shape index: {}]
  %s4 = inlined_call_operand.vmem [shape: bf16[128,64], index: 4, kind: input, shape index: {}]
  %s5 = inlined_call_operand.vmem [shape: bf16[64,32], index: 5, kind: input, shape index: {}]
  %s6 = inlined_call_operand.vmem [shape: bf16[32,128], index: 6, kind: input, shape index: {}]
  %s7 = inlined_call_operand.vmem [shape: f32[8,512], index: 7, kind: input, shape index: {}]
  %s8 = inlined_call_operand.vmem [shape: f32[8,256], index: 8, kind: output, shape index: {}]
  %s9 = sld [smem:[#allocation0]]
  $region42: #{scgraph_forward.1} parent=0
    _
  %s11 = ssub.s32 1, %s9
  %s12 = scalar_select 0, %s11, %s9
  // Predicated region
  $region2: #{scgraph_forward.1} parent=0 // pred_check
    _
  $region3: #{scgraph_forward.1} parent=0 // pred_check_branch
    %14 = sbr.rel (0) target = $region5
  $region4: #{scgraph_forward.1} parent=0 // pred_region
    _
  $region5: #{scgraph_forward.1} parent=0 // pred_fallthru
    _
  // Predicated region
  $region6: #{scgraph_forward.1} parent=0 // pred_check
    _
  $region7: #{scgraph_forward.1} parent=0 // pred_check_branch
    %16 = sbr.rel (0) target = $region9
  $region8: #{scgraph_forward.1} parent=0 // pred_region
    _
  $region9: #{scgraph_forward.1} parent=0 // pred_fallthru
    _
  // Predicated region
  $region10: #{scgraph_forward.1} parent=0 // pred_check
    _
  $region11: #{scgraph_forward.1} parent=0 // pred_check_branch
    %18 = sbr.rel (0) target = $region13
  $region12: #{scgraph_forward.1} parent=0 // pred_region
    _
  $region13: #{scgraph_forward.1} parent=0 // pred_fallthru
    _
  // Predicated region
  $region14: #{scgraph_forward.1} parent=0 // pred_check
    _
  $region15: #{scgraph_forward.1} parent=0 // pred_check_branch
    %20 = sbr.rel (0) target = $region17
  $region16: #{scgraph_forward.1} parent=0 // pred_region
    _
  $region17: #{scgraph_forward.1} parent=0 // pred_fallthru
    _
  // Predicated region
  $region18: #{scgraph_forward.1} parent=0 // pred_check
    _
  $region19: #{scgraph_forward.1} parent=0 // pred_check_branch
    %22 = sbr.rel (0) target = $region21
  $region20: #{scgraph_forward.1} parent=0 // pred_region
    _
  $region21: #{scgraph_forward.1} parent=0 // pred_fallthru
    _
  // Predicated region
  $region22: #{scgraph_forward.1} parent=0 // pred_check
    _
  $region23: #{scgraph_forward.1} parent=0 // pred_check_branch
    %24 = sbr.rel (0) target = $region25
  $region24: #{scgraph_forward.1} parent=0 // pred_region
    _
  $region25: #{scgraph_forward.1} parent=0 // pred_fallthru
    _
  // Predicated region
  $region26: #{scgraph_forward.1} parent=0 // pred_check
    _
  $region27: #{scgraph_forward.1} parent=0 // pred_check_branch
    %26 = sbr.rel (0) target = $region29
  $region28: #{scgraph_forward.1} parent=0 // pred_region
    _
  $region29: #{scgraph_forward.1} parent=0 // pred_fallthru
    _
  // Predicated region
  $region30: #{scgraph_forward.1} parent=0 // pred_check
    _
  $region31: #{scgraph_forward.1} parent=0 // pred_check_branch
    %28 = sbr.rel (0) target = $region33
  $region32: #{scgraph_forward.1} parent=0 // pred_region
    _
  $region33: #{scgraph_forward.1} parent=0 // pred_fallthru
    _
  %v30 = vld [vmem:[%s0] sm:$0xf]
  %v31 = vld [vmem:[%s1] sm:$0xff]
  %v32 = vld [vmem:[%s1 + $0x8] sm:$0xff]
  %v33 = vld [vmem:[%s1 + $0x10] sm:$0xff]
  %v34 = vld [vmem:[%s1 + $0x18] sm:$0xff]
  %v35 = vld [vmem:[%s1 + $0x20] sm:$0xff]
  %v36 = vld [vmem:[%s1 + $0x28] sm:$0xff]
  %v37 = vld [vmem:[%s1 + $0x30] sm:$0xff]
  %v38 = vld [vmem:[%s1 + $0x38] sm:$0xff]
  %v39 = vld [vmem:[%s1 + $0x40] sm:$0xff]
  %v40 = vld [vmem:[%s1 + $0x48] sm:$0xff]
  %v41 = vld [vmem:[%s1 + $0x50] sm:$0xff]
  %v42 = vld [vmem:[%s1 + $0x58] sm:$0xff]
  %v43 = vld [vmem:[%s1 + $0x60] sm:$0xff]
  %v44 = vld [vmem:[%s1 + $0x68] sm:$0xff]
  %v45 = vld [vmem:[%s1 + $0x70] sm:$0xff]
  %v46 = vld [vmem:[%s1 + $0x78] sm:$0xff]
  %v47 = vld [vmem:[%s1 + $0x80] sm:$0xff]
  %v48 = vld [vmem:[%s1 + $0x88] sm:$0xff]
  %v49 = vld [vmem:[%s1 + $0x90] sm:$0xff]
  %v50 = vld [vmem:[%s1 + $0x98] sm:$0xff]
  %v51 = vld [vmem:[%s1 + $0xa0] sm:$0xff]
  %v52 = vld [vmem:[%s1 + $0xa8] sm:$0xff]
  %v53 = vld [vmem:[%s1 + $0xb0] sm:$0xff]
  %v54 = vld [vmem:[%s1 + $0xb8] sm:$0xff]
  %v55 = vld [vmem:[%s1 + $0xc0] sm:$0xff]
  %v56 = vld [vmem:[%s1 + $0xc8] sm:$0xff]
  %v57 = vld [vmem:[%s1 + $0xd0] sm:$0xff]
  %v58 = vld [vmem:[%s1 + $0xd8] sm:$0xff]
  %v59 = vld [vmem:[%s1 + $0xe0] sm:$0xff]
  %v60 = vld [vmem:[%s1 + $0xe8] sm:$0xff]
  %v61 = vld [vmem:[%s1 + $0xf0] sm:$0xff]
  %v62 = vld [vmem:[%s1 + $0xf8] sm:$0xff]
  %v63 = vld [vmem:[%s7] ss:$8 sm:$0xf]
  %v65 = vlaneseq
  %v66 = vshrl.u32 %v65, 7
  %v67 = vsub.s32 0, %v66
  %v68 = vrot.slane %v63, %v67
  %v69 = vlaneseq
  %v70 = vshrl.u32 %v69, 7
  %v71 = vsub.s32 1, %v70
  %v72 = vrot.slane %v63, %v71
  %v73 = vlaneseq
  %v74 = vshrl.u32 %v73, 7
  %v75 = vsub.s32 2, %v74
  %v76 = vrot.slane %v63, %v75
  %v77 = vlaneseq
  %v78 = vshrl.u32 %v77, 7
  %v79 = vsub.s32 3, %v78
  %v80 = vrot.slane %v63, %v79
  %v117 = vunpack.c.l.b16 %v31
  %v118 = vunpack.c.h.b16 %v31
  %v119 = vunpack.c.l.b16 %v32
  %v120 = vunpack.c.h.b16 %v32
  %v121 = vunpack.c.l.b16 %v33
  %v122 = vunpack.c.h.b16 %v33
  %v123 = vunpack.c.l.b16 %v34
  %v124 = vunpack.c.h.b16 %v34
  %v125 = vunpack.c.l.b16 %v35
  %v126 = vunpack.c.h.b16 %v35
  %v127 = vunpack.c.l.b16 %v36
  %v128 = vunpack.c.h.b16 %v36
  %v129 = vunpack.c.l.b16 %v37
  %v130 = vunpack.c.h.b16 %v37
  %v131 = vunpack.c.l.b16 %v38
  %v132 = vunpack.c.h.b16 %v38
  %v133 = vunpack.c.l.b16 %v39
  %v134 = vunpack.c.h.b16 %v39
  %v135 = vunpack.c.l.b16 %v40
  %v136 = vunpack.c.h.b16 %v40
  %v137 = vunpack.c.l.b16 %v41
  %v138 = vunpack.c.h.b16 %v41
  %v139 = vunpack.c.l.b16 %v42
  %v140 = vunpack.c.h.b16 %v42
  %v141 = vunpack.c.l.b16 %v43
  %v142 = vunpack.c.h.b16 %v43
  %v143 = vunpack.c.l.b16 %v44
  %v144 = vunpack.c.h.b16 %v44
  %v145 = vunpack.c.l.b16 %v45
  %v146 = vunpack.c.h.b16 %v45
  %v147 = vunpack.c.l.b16 %v46
  %v148 = vunpack.c.h.b16 %v46
  %v149 = vunpack.c.l.b16 %v47
  %v150 = vunpack.c.h.b16 %v47
  %v151 = vunpack.c.l.b16 %v48
  %v152 = vunpack.c.h.b16 %v48
  %v153 = vunpack.c.l.b16 %v49
  %v154 = vunpack.c.h.b16 %v49
  %v155 = vunpack.c.l.b16 %v50
  %v156 = vunpack.c.h.b16 %v50
  %v157 = vunpack.c.l.b16 %v51
  %v158 = vunpack.c.h.b16 %v51
  %v159 = vunpack.c.l.b16 %v52
  %v160 = vunpack.c.h.b16 %v52
  %v161 = vunpack.c.l.b16 %v53
  %v162 = vunpack.c.h.b16 %v53
  %v163 = vunpack.c.l.b16 %v54
  %v164 = vunpack.c.h.b16 %v54
  %v165 = vunpack.c.l.b16 %v55
  %v166 = vunpack.c.h.b16 %v55
  %v167 = vunpack.c.l.b16 %v56
  %v168 = vunpack.c.h.b16 %v56
  %v169 = vunpack.c.l.b16 %v57
  %v170 = vunpack.c.h.b16 %v57
  %v171 = vunpack.c.l.b16 %v58
  %v172 = vunpack.c.h.b16 %v58
  %v173 = vunpack.c.l.b16 %v59
  %v174 = vunpack.c.h.b16 %v59
  %v175 = vunpack.c.l.b16 %v60
  %v176 = vunpack.c.h.b16 %v60
  %v177 = vunpack.c.l.b16 %v61
  %v178 = vunpack.c.h.b16 %v61
  %v179 = vunpack.c.l.b16 %v62
  %v180 = vunpack.c.h.b16 %v62
  %v181 = vpack.c.b16 %v121, %v117
  %v182 = vpack.c.b16 %v122, %v118
  %v183 = vpack.c.b16 %v123, %v119
  %v184 = vpack.c.b16 %v124, %v120
  %v185 = vpack.c.b16 %v129, %v125
  %v186 = vpack.c.b16 %v130, %v126
  %v187 = vpack.c.b16 %v131, %v127
  %v188 = vpack.c.b16 %v132, %v128
  %v189 = vpack.c.b16 %v137, %v133
  %v190 = vpack.c.b16 %v138, %v134
  %v191 = vpack.c.b16 %v139, %v135
  %v192 = vpack.c.b16 %v140, %v136
  %v193 = vpack.c.b16 %v145, %v141
  %v194 = vpack.c.b16 %v146, %v142
  %v195 = vpack.c.b16 %v147, %v143
  %v196 = vpack.c.b16 %v148, %v144
  %v197 = vpack.c.b16 %v153, %v149
  %v198 = vpack.c.b16 %v154, %v150
  %v199 = vpack.c.b16 %v155, %v151
  %v200 = vpack.c.b16 %v156, %v152
  %v201 = vpack.c.b16 %v161, %v157
  %v202 = vpack.c.b16 %v162, %v158
  %v203 = vpack.c.b16 %v163, %v159
  %v204 = vpack.c.b16 %v164, %v160
  %v205 = vpack.c.b16 %v169, %v165
  %v206 = vpack.c.b16 %v170, %v166
  %v207 = vpack.c.b16 %v171, %v167
  %v208 = vpack.c.b16 %v172, %v168
  %v209 = vpack.c.b16 %v177, %v173
  %v210 = vpack.c.b16 %v178, %v174
  %v211 = vpack.c.b16 %v179, %v175
  %v212 = vpack.c.b16 %v180, %v176
  %245 = vmatprep.subr.bf16.mxu0 %v182
  %246 = vmatpush1.bf16.msra.mxu0 %v181
  %247 = vmatprep.subr.bf16.mxu0 %v186
  %248 = vmatpush1.bf16.msra.mxu0 %v185
  %249 = vmatprep.subr.bf16.mxu0 %v190
  %250 = vmatpush1.bf16.msra.mxu0 %v189
  %251 = vmatprep.subr.bf16.mxu0 %v194
  %252 = vmatpush1.bf16.msra.mxu0 %v193
  %253 = vmatprep.subr.bf16.mxu0 %v198
  %254 = vmatpush1.bf16.msra.mxu0 %v197
  %255 = vmatprep.subr.bf16.mxu0 %v202
  %256 = vmatpush1.bf16.msra.mxu0 %v201
  %257 = vmatprep.subr.bf16.mxu0 %v206
  %258 = vmatpush1.bf16.msra.mxu0 %v205
  %259 = vmatprep.subr.bf16.mxu0 %v210
  %260 = vmatpush1.bf16.msra.mxu0 %v209
  %261 = vmatprep.subr.bf16.mxu0 0
  %262 = vmatpush1.bf16.msra.mxu0 0
  %263 = vmatprep.subr.bf16.mxu0 0
  %264 = vmatpush1.bf16.msra.mxu0 0
  %265 = vmatprep.subr.bf16.mxu0 0
  %266 = vmatpush1.bf16.msra.mxu0 0
  %267 = vmatprep.subr.bf16.mxu0 0
  %268 = vmatpush1.bf16.msra.mxu0 0
  %269 = vmatprep.subr.bf16.mxu0 0
  %270 = vmatpush1.bf16.msra.mxu0 0
  %271 = vmatprep.subr.bf16.mxu0 0
  %272 = vmatpush1.bf16.msra.mxu0 0
  %273 = vmatprep.subr.bf16.mxu0 0
  %274 = vmatpush1.bf16.msra.mxu0 0
  %275 = vmatprep.subr.bf16.mxu0 0
  %276 = vmatpush1.bf16.msra.mxu0 0
  %277 = vmatprep.mubr.bf16.mxu0 0
  %278 = vmatmul.mubr.bf16.gmra.mrb[0].mxu0 %v30
  %v279 = vpop.f32.mrb[0].mxu0
  %v280 = vadd.f32 %v68, %v279
  %v281 = vpop.f32.mrb[0].mxu0
  %v282 = vadd.f32 %v72, %v281
  %v283 = vpop.f32.mrb[0].mxu0
  %v284 = vpop.f32.mrb[0].mxu0
  %285 = vdwg.mxu0
  %286 = vmatprep.subr.bf16.mxu0 %v184
  %287 = vmatpush1.bf16.msra.mxu0 %v183
  %288 = vmatprep.subr.bf16.mxu0 %v188
  %289 = vmatpush1.bf16.msra.mxu0 %v187
  %290 = vmatprep.subr.bf16.mxu0 %v192
  %291 = vmatpush1.bf16.msra.mxu0 %v191
  %292 = vmatprep.subr.bf16.mxu0 %v196
  %293 = vmatpush1.bf16.msra.mxu0 %v195
  %294 = vmatprep.subr.bf16.mxu0 %v200
  %295 = vmatpush1.bf16.msra.mxu0 %v199
  %296 = vmatprep.subr.bf16.mxu0 %v204
  %297 = vmatpush1.bf16.msra.mxu0 %v203
  %298 = vmatprep.subr.bf16.mxu0 %v208
  %299 = vmatpush1.bf16.msra.mxu0 %v207
  %300 = vmatprep.subr.bf16.mxu0 %v212
  %301 = vmatpush1.bf16.msra.mxu0 %v211
  %302 = vmatprep.subr.bf16.mxu0 0
  %303 = vmatpush1.bf16.msra.mxu0 0
  %304 = vmatprep.subr.bf16.mxu0 0
  %305 = vmatpush1.bf16.msra.mxu0 0
  %306 = vmatprep.subr.bf16.mxu0 0
  %307 = vmatpush1.bf16.msra.mxu0 0
  %308 = vmatprep.subr.bf16.mxu0 0
  %309 = vmatpush1.bf16.msra.mxu0 0
  %310 = vmatprep.subr.bf16.mxu0 0
  %311 = vmatpush1.bf16.msra.mxu0 0
  %312 = vmatprep.subr.bf16.mxu0 0
  %313 = vmatpush1.bf16.msra.mxu0 0
  %314 = vmatprep.subr.bf16.mxu0 0
  %315 = vmatpush1.bf16.msra.mxu0 0
  %316 = vmatprep.subr.bf16.mxu0 0
  %317 = vmatpush1.bf16.msra.mxu0 0
  %318 = vmatprep.mubr.bf16.mxu0 0
  %319 = vmatmul.mubr.bf16.gmra.mrb[0].mxu0 %v30
  %v320 = vpop.f32.mrb[0].mxu0
  %v321 = vadd.f32 %v76, %v320
  %v322 = vpop.f32.mrb[0].mxu0
  %v323 = vadd.f32 %v80, %v322
  %v324 = vpop.f32.mrb[0].mxu0
  %v325 = vpop.f32.mrb[0].mxu0
  %326 = vdwg.mxu0
  %v327 = vmax.f32 %v280, 0.0
  %v328 = vmax.f32 %v282, 0.0
  %v329 = vmax.f32 %v321, 0.0
  %v330 = vmax.f32 %v323, 0.0
  %v331 = vadd.f32 %v327, %v328
  %v332 = vadd.f32 %v331, %v329
  %v333 = vadd.f32 %v332, %v330
  %334 = vadd.xlane.f32.xlu0 %v333
  %v335 = vpop.xlane.xlu0 %334
  %v336 = vrcp.pop 512.0
  %v337 = vmul.f32 %v335, %v336
  %v338 = vsub.f32 %v327, %v337
  %v339 = vsub.f32 %v328, %v337
  %v340 = vsub.f32 %v329, %v337
  %v341 = vsub.f32 %v330, %v337
  %v342 = vmul.f32 %v338, %v338
  %v343 = vmul.f32 %v339, %v339
  %v344 = vmul.f32 %v340, %v340
  %v345 = vmul.f32 %v341, %v341
  %v346 = vadd.f32 %v342, %v343
  %v347 = vadd.f32 %v346, %v344
  %v348 = vadd.f32 %v347, %v345
  %349 = vadd.xlane.f32.xlu0 %v348
  %v350 = vpop.xlane.xlu0 %349
  %v351 = vmul.f32 %v350, %v336
  %v352 = vadd.f32 %v351, 1e-05
  %v353 = vrsqrt.pop %v352
  %v354 = vmul.f32 %v338, %v353
  %v355 = vmul.f32 %v339, %v353
  %v356 = vmul.f32 %v340, %v353
  %v357 = vmul.f32 %v341, %v353
  %s358 = scalar_lea.vmem %s7, 1
  %v359 = vld [vmem:[%s358] ss:$8 sm:$0xf]
  %v361 = vlaneseq
  %v362 = vshrl.u32 %v361, 7
  %v363 = vsub.s32 0, %v362
  %v364 = vrot.slane %v359, %v363
  %v365 = vlaneseq
  %v366 = vshrl.u32 %v365, 7
  %v367 = vsub.s32 1, %v366
  %v368 = vrot.slane %v359, %v367
  %v369 = vlaneseq
  %v370 = vshrl.u32 %v369, 7
  %v371 = vsub.s32 2, %v370
  %v372 = vrot.slane %v359, %v371
  %v373 = vlaneseq
  %v374 = vshrl.u32 %v373, 7
  %v375 = vsub.s32 3, %v374
  %v376 = vrot.slane %v359, %v375
  %v381 = vmul.f32 %v354, %v364
  %v382 = vmul.f32 %v355, %v368
  %v383 = vmul.f32 %v356, %v372
  %v384 = vmul.f32 %v357, %v376
  %s385 = scalar_lea.vmem %s7, 2
  %v386 = vld [vmem:[%s385] ss:$8 sm:$0xf]
  %v388 = vlaneseq
  %v389 = vshrl.u32 %v388, 7
  %v390 = vsub.s32 0, %v389
  %v391 = vrot.slane %v386, %v390
  %v392 = vlaneseq
  %v393 = vshrl.u32 %v392, 7
  %v394 = vsub.s32 1, %v393
  %v395 = vrot.slane %v386, %v394
  %v396 = vlaneseq
  %v397 = vshrl.u32 %v396, 7
  %v398 = vsub.s32 2, %v397
  %v399 = vrot.slane %v386, %v398
  %v400 = vlaneseq
  %v401 = vshrl.u32 %v400, 7
  %v402 = vsub.s32 3, %v401
  %v403 = vrot.slane %v386, %v402
  %v408 = vadd.f32 %v381, %v391
  %v409 = vadd.f32 %v382, %v395
  %v410 = vadd.f32 %v383, %v399
  %v411 = vadd.f32 %v384, %v403
  %v412 = vpack.c.bf16 %v408, %v408
  %v413 = vpack.c.bf16 %v409, %v409
  %v414 = vpack.c.bf16 %v410, %v410
  %v415 = vpack.c.bf16 %v411, %v411
  %v416 = vld [vmem:[%s2] sm:$0xff]
  %v417 = vld [vmem:[%s2 + $0x8] sm:$0xff]
  %v418 = vld [vmem:[%s2 + $0x10] sm:$0xff]
  %v419 = vld [vmem:[%s2 + $0x18] sm:$0xff]
  %v420 = vld [vmem:[%s2 + $0x20] sm:$0xff]
  %v421 = vld [vmem:[%s2 + $0x28] sm:$0xff]
  %v422 = vld [vmem:[%s2 + $0x30] sm:$0xff]
  %v423 = vld [vmem:[%s2 + $0x38] sm:$0xff]
  %v424 = vld [vmem:[%s2 + $0x40] sm:$0xff]
  %v425 = vld [vmem:[%s2 + $0x48] sm:$0xff]
  %v426 = vld [vmem:[%s2 + $0x50] sm:$0xff]
  %v427 = vld [vmem:[%s2 + $0x58] sm:$0xff]
  %v428 = vld [vmem:[%s2 + $0x60] sm:$0xff]
  %v429 = vld [vmem:[%s2 + $0x68] sm:$0xff]
  %v430 = vld [vmem:[%s2 + $0x70] sm:$0xff]
  %v431 = vld [vmem:[%s2 + $0x78] sm:$0xff]
  %v432 = vld [vmem:[%s2 + $0x80] sm:$0xff]
  %v433 = vld [vmem:[%s2 + $0x88] sm:$0xff]
  %v434 = vld [vmem:[%s2 + $0x90] sm:$0xff]
  %v435 = vld [vmem:[%s2 + $0x98] sm:$0xff]
  %v436 = vld [vmem:[%s2 + $0xa0] sm:$0xff]
  %v437 = vld [vmem:[%s2 + $0xa8] sm:$0xff]
  %v438 = vld [vmem:[%s2 + $0xb0] sm:$0xff]
  %v439 = vld [vmem:[%s2 + $0xb8] sm:$0xff]
  %v440 = vld [vmem:[%s2 + $0xc0] sm:$0xff]
  %v441 = vld [vmem:[%s2 + $0xc8] sm:$0xff]
  %v442 = vld [vmem:[%s2 + $0xd0] sm:$0xff]
  %v443 = vld [vmem:[%s2 + $0xd8] sm:$0xff]
  %v444 = vld [vmem:[%s2 + $0xe0] sm:$0xff]
  %v445 = vld [vmem:[%s2 + $0xe8] sm:$0xff]
  %v446 = vld [vmem:[%s2 + $0xf0] sm:$0xff]
  %v447 = vld [vmem:[%s2 + $0xf8] sm:$0xff]
  %v448 = vld [vmem:[%s2 + $0x100] sm:$0xff]
  %v449 = vld [vmem:[%s2 + $0x108] sm:$0xff]
  %v450 = vld [vmem:[%s2 + $0x110] sm:$0xff]
  %v451 = vld [vmem:[%s2 + $0x118] sm:$0xff]
  %v452 = vld [vmem:[%s2 + $0x120] sm:$0xff]
  %v453 = vld [vmem:[%s2 + $0x128] sm:$0xff]
  %v454 = vld [vmem:[%s2 + $0x130] sm:$0xff]
  %v455 = vld [vmem:[%s2 + $0x138] sm:$0xff]
  %v456 = vld [vmem:[%s2 + $0x140] sm:$0xff]
  %v457 = vld [vmem:[%s2 + $0x148] sm:$0xff]
  %v458 = vld [vmem:[%s2 + $0x150] sm:$0xff]
  %v459 = vld [vmem:[%s2 + $0x158] sm:$0xff]
  %v460 = vld [vmem:[%s2 + $0x160] sm:$0xff]
  %v461 = vld [vmem:[%s2 + $0x168] sm:$0xff]
  %v462 = vld [vmem:[%s2 + $0x170] sm:$0xff]
  %v463 = vld [vmem:[%s2 + $0x178] sm:$0xff]
  %v464 = vld [vmem:[%s2 + $0x180] sm:$0xff]
  %v465 = vld [vmem:[%s2 + $0x188] sm:$0xff]
  %v466 = vld [vmem:[%s2 + $0x190] sm:$0xff]
  %v467 = vld [vmem:[%s2 + $0x198] sm:$0xff]
  %v468 = vld [vmem:[%s2 + $0x1a0] sm:$0xff]
  %v469 = vld [vmem:[%s2 + $0x1a8] sm:$0xff]
  %v470 = vld [vmem:[%s2 + $0x1b0] sm:$0xff]
  %v471 = vld [vmem:[%s2 + $0x1b8] sm:$0xff]
  %v472 = vld [vmem:[%s2 + $0x1c0] sm:$0xff]
  %v473 = vld [vmem:[%s2 + $0x1c8] sm:$0xff]
  %v474 = vld [vmem:[%s2 + $0x1d0] sm:$0xff]
  %v475 = vld [vmem:[%s2 + $0x1d8] sm:$0xff]
  %v476 = vld [vmem:[%s2 + $0x1e0] sm:$0xff]
  %v477 = vld [vmem:[%s2 + $0x1e8] sm:$0xff]
  %v478 = vld [vmem:[%s2 + $0x1f0] sm:$0xff]
  %v479 = vld [vmem:[%s2 + $0x1f8] sm:$0xff]
  %s480 = scalar_lea.vmem %s7, 3
  %v481 = vld [vmem:[%s480] ss:$8 sm:$0x3]
  %v483 = vlaneseq
  %v484 = vshrl.u32 %v483, 7
  %v485 = vsub.s32 0, %v484
  %v486 = vrot.slane %v481, %v485
  %v487 = vlaneseq
  %v488 = vshrl.u32 %v487, 7
  %v489 = vsub.s32 1, %v488
  %v490 = vrot.slane %v481, %v489
  %v557 = vunpack.c.l.b16 %v416
  %v558 = vunpack.c.h.b16 %v416
  %v559 = vunpack.c.l.b16 %v417
  %v560 = vunpack.c.h.b16 %v417
  %v561 = vunpack.c.l.b16 %v418
  %v562 = vunpack.c.h.b16 %v418
  %v563 = vunpack.c.l.b16 %v419
  %v564 = vunpack.c.h.b16 %v419
  %v565 = vunpack.c.l.b16 %v420
  %v566 = vunpack.c.h.b16 %v420
  %v567 = vunpack.c.l.b16 %v421
  %v568 = vunpack.c.h.b16 %v421
  %v569 = vunpack.c.l.b16 %v422
  %v570 = vunpack.c.h.b16 %v422
  %v571 = vunpack.c.l.b16 %v423
  %v572 = vunpack.c.h.b16 %v423
  %v573 = vunpack.c.l.b16 %v424
  %v574 = vunpack.c.h.b16 %v424
  %v575 = vunpack.c.l.b16 %v425
  %v576 = vunpack.c.h.b16 %v425
  %v577 = vunpack.c.l.b16 %v426
  %v578 = vunpack.c.h.b16 %v426
  %v579 = vunpack.c.l.b16 %v427
  %v580 = vunpack.c.h.b16 %v427
  %v581 = vunpack.c.l.b16 %v428
  %v582 = vunpack.c.h.b16 %v428
  %v583 = vunpack.c.l.b16 %v429
  %v584 = vunpack.c.h.b16 %v429
  %v585 = vunpack.c.l.b16 %v430
  %v586 = vunpack.c.h.b16 %v430
  %v587 = vunpack.c.l.b16 %v431
  %v588 = vunpack.c.h.b16 %v431
  %v589 = vunpack.c.l.b16 %v432
  %v590 = vunpack.c.h.b16 %v432
  %v591 = vunpack.c.l.b16 %v433
  %v592 = vunpack.c.h.b16 %v433
  %v593 = vunpack.c.l.b16 %v434
  %v594 = vunpack.c.h.b16 %v434
  %v595 = vunpack.c.l.b16 %v435
  %v596 = vunpack.c.h.b16 %v435
  %v597 = vunpack.c.l.b16 %v436
  %v598 = vunpack.c.h.b16 %v436
  %v599 = vunpack.c.l.b16 %v437
  %v600 = vunpack.c.h.b16 %v437
  %v601 = vunpack.c.l.b16 %v438
  %v602 = vunpack.c.h.b16 %v438
  %v603 = vunpack.c.l.b16 %v439
  %v604 = vunpack.c.h.b16 %v439
  %v605 = vunpack.c.l.b16 %v440
  %v606 = vunpack.c.h.b16 %v440
  %v607 = vunpack.c.l.b16 %v441
  %v608 = vunpack.c.h.b16 %v441
  %v609 = vunpack.c.l.b16 %v442
  %v610 = vunpack.c.h.b16 %v442
  %v611 = vunpack.c.l.b16 %v443
  %v612 = vunpack.c.h.b16 %v443
  %v613 = vunpack.c.l.b16 %v444
  %v614 = vunpack.c.h.b16 %v444
  %v615 = vunpack.c.l.b16 %v445
  %v616 = vunpack.c.h.b16 %v445
  %v617 = vunpack.c.l.b16 %v446
  %v618 = vunpack.c.h.b16 %v446
  %v619 = vunpack.c.l.b16 %v447
  %v620 = vunpack.c.h.b16 %v447
  %v621 = vunpack.c.l.b16 %v448
  %v622 = vunpack.c.h.b16 %v448
  %v623 = vunpack.c.l.b16 %v449
  %v624 = vunpack.c.h.b16 %v449
  %v625 = vunpack.c.l.b16 %v450
  %v626 = vunpack.c.h.b16 %v450
  %v627 = vunpack.c.l.b16 %v451
  %v628 = vunpack.c.h.b16 %v451
  %v629 = vunpack.c.l.b16 %v452
  %v630 = vunpack.c.h.b16 %v452
  %v631 = vunpack.c.l.b16 %v453
  %v632 = vunpack.c.h.b16 %v453
  %v633 = vunpack.c.l.b16 %v454
  %v634 = vunpack.c.h.b16 %v454
  %v635 = vunpack.c.l.b16 %v455
  %v636 = vunpack.c.h.b16 %v455
  %v637 = vunpack.c.l.b16 %v456
  %v638 = vunpack.c.h.b16 %v456
  %v639 = vunpack.c.l.b16 %v457
  %v640 = vunpack.c.h.b16 %v457
  %v641 = vunpack.c.l.b16 %v458
  %v642 = vunpack.c.h.b16 %v458
  %v643 = vunpack.c.l.b16 %v459
  %v644 = vunpack.c.h.b16 %v459
  %v645 = vunpack.c.l.b16 %v460
  %v646 = vunpack.c.h.b16 %v460
  %v647 = vunpack.c.l.b16 %v461
  %v648 = vunpack.c.h.b16 %v461
  %v649 = vunpack.c.l.b16 %v462
  %v650 = vunpack.c.h.b16 %v462
  %v651 = vunpack.c.l.b16 %v463
  %v652 = vunpack.c.h.b16 %v463
  %v653 = vunpack.c.l.b16 %v464
  %v654 = vunpack.c.h.b16 %v464
  %v655 = vunpack.c.l.b16 %v465
  %v656 = vunpack.c.h.b16 %v465
  %v657 = vunpack.c.l.b16 %v466
  %v658 = vunpack.c.h.b16 %v466
  %v659 = vunpack.c.l.b16 %v467
  %v660 = vunpack.c.h.b16 %v467
  %v661 = vunpack.c.l.b16 %v468
  %v662 = vunpack.c.h.b16 %v468
  %v663 = vunpack.c.l.b16 %v469
  %v664 = vunpack.c.h.b16 %v469
  %v665 = vunpack.c.l.b16 %v470
  %v666 = vunpack.c.h.b16 %v470
  %v667 = vunpack.c.l.b16 %v471
  %v668 = vunpack.c.h.b16 %v471
  %v669 = vunpack.c.l.b16 %v472
  %v670 = vunpack.c.h.b16 %v472
  %v671 = vunpack.c.l.b16 %v473
  %v672 = vunpack.c.h.b16 %v473
  %v673 = vunpack.c.l.b16 %v474
  %v674 = vunpack.c.h.b16 %v474
  %v675 = vunpack.c.l.b16 %v475
  %v676 = vunpack.c.h.b16 %v475
  %v677 = vunpack.c.l.b16 %v476
  %v678 = vunpack.c.h.b16 %v476
  %v679 = vunpack.c.l.b16 %v477
  %v680 = vunpack.c.h.b16 %v477
  %v681 = vunpack.c.l.b16 %v478
  %v682 = vunpack.c.h.b16 %v478
  %v683 = vunpack.c.l.b16 %v479
  %v684 = vunpack.c.h.b16 %v479
  %v685 = vpack.c.b16 %v559, %v557
  %v686 = vpack.c.b16 %v560, %v558
  %v687 = vpack.c.b16 %v563, %v561
  %v688 = vpack.c.b16 %v564, %v562
  %v689 = vpack.c.b16 %v567, %v565
  %v690 = vpack.c.b16 %v568, %v566
  %v691 = vpack.c.b16 %v571, %v569
  %v692 = vpack.c.b16 %v572, %v570
  %v693 = vpack.c.b16 %v575, %v573
  %v694 = vpack.c.b16 %v576, %v574
  %v695 = vpack.c.b16 %v579, %v577
  %v696 = vpack.c.b16 %v580, %v578
  %v697 = vpack.c.b16 %v583, %v581
  %v698 = vpack.c.b16 %v584, %v582
  %v699 = vpack.c.b16 %v587, %v585
  %v700 = vpack.c.b16 %v588, %v586
  %v701 = vpack.c.b16 %v591, %v589
  %v702 = vpack.c.b16 %v592, %v590
  %v703 = vpack.c.b16 %v595, %v593
  %v704 = vpack.c.b16 %v596, %v594
  %v705 = vpack.c.b16 %v599, %v597
  %v706 = vpack.c.b16 %v600, %v598
  %v707 = vpack.c.b16 %v603, %v601
  %v708 = vpack.c.b16 %v604, %v602
  %v709 = vpack.c.b16 %v607, %v605
  %v710 = vpack.c.b16 %v608, %v606
  %v711 = vpack.c.b16 %v611, %v609
  %v712 = vpack.c.b16 %v612, %v610
  %v713 = vpack.c.b16 %v615, %v613
  %v714 = vpack.c.b16 %v616, %v614
  %v715 = vpack.c.b16 %v619, %v617
  %v716 = vpack.c.b16 %v620, %v618
  %v717 = vpack.c.b16 %v623, %v621
  %v718 = vpack.c.b16 %v624, %v622
  %v719 = vpack.c.b16 %v627, %v625
  %v720 = vpack.c.b16 %v628, %v626
  %v721 = vpack.c.b16 %v631, %v629
  %v722 = vpack.c.b16 %v632, %v630
  %v723 = vpack.c.b16 %v635, %v633
  %v724 = vpack.c.b16 %v636, %v634
  %v725 = vpack.c.b16 %v639, %v637
  %v726 = vpack.c.b16 %v640, %v638
  %v727 = vpack.c.b16 %v643, %v641
  %v728 = vpack.c.b16 %v644, %v642
  %v729 = vpack.c.b16 %v647, %v645
  %v730 = vpack.c.b16 %v648, %v646
  %v731 = vpack.c.b16 %v651, %v649
  %v732 = vpack.c.b16 %v652, %v650
  %v733 = vpack.c.b16 %v655, %v653
  %v734 = vpack.c.b16 %v656, %v654
  %v735 = vpack.c.b16 %v659, %v657
  %v736 = vpack.c.b16 %v660, %v658
  %v737 = vpack.c.b16 %v663, %v661
  %v738 = vpack.c.b16 %v664, %v662
  %v739 = vpack.c.b16 %v667, %v665
  %v740 = vpack.c.b16 %v668, %v666
  %v741 = vpack.c.b16 %v671, %v669
  %v742 = vpack.c.b16 %v672, %v670
  %v743 = vpack.c.b16 %v675, %v673
  %v744 = vpack.c.b16 %v676, %v674
  %v745 = vpack.c.b16 %v679, %v677
  %v746 = vpack.c.b16 %v680, %v678
  %v747 = vpack.c.b16 %v683, %v681
  %v748 = vpack.c.b16 %v684, %v682
  %813 = vmatprep.subr.bf16.mxu0 %v686
  %814 = vmatpush1.bf16.msra.mxu0 %v685
  %815 = vmatprep.subr.bf16.mxu0 %v688
  %816 = vmatpush1.bf16.msra.mxu0 %v687
  %817 = vmatprep.subr.bf16.mxu0 %v690
  %818 = vmatpush1.bf16.msra.mxu0 %v689
  %819 = vmatprep.subr.bf16.mxu0 %v692
  %820 = vmatpush1.bf16.msra.mxu0 %v691
  %821 = vmatprep.subr.bf16.mxu0 %v694
  %822 = vmatpush1.bf16.msra.mxu0 %v693
  %823 = vmatprep.subr.bf16.mxu0 %v696
  %824 = vmatpush1.bf16.msra.mxu0 %v695
  %825 = vmatprep.subr.bf16.mxu0 %v698
  %826 = vmatpush1.bf16.msra.mxu0 %v697
  %827 = vmatprep.subr.bf16.mxu0 %v700
  %828 = vmatpush1.bf16.msra.mxu0 %v699
  %829 = vmatprep.subr.bf16.mxu0 %v702
  %830 = vmatpush1.bf16.msra.mxu0 %v701
  %831 = vmatprep.subr.bf16.mxu0 %v704
  %832 = vmatpush1.bf16.msra.mxu0 %v703
  %833 = vmatprep.subr.bf16.mxu0 %v706
  %834 = vmatpush1.bf16.msra.mxu0 %v705
  %835 = vmatprep.subr.bf16.mxu0 %v708
  %836 = vmatpush1.bf16.msra.mxu0 %v707
  %837 = vmatprep.subr.bf16.mxu0 %v710
  %838 = vmatpush1.bf16.msra.mxu0 %v709
  %839 = vmatprep.subr.bf16.mxu0 %v712
  %840 = vmatpush1.bf16.msra.mxu0 %v711
  %841 = vmatprep.subr.bf16.mxu0 %v714
  %842 = vmatpush1.bf16.msra.mxu0 %v713
  %843 = vmatprep.subr.bf16.mxu0 %v716
  %844 = vmatpush1.bf16.msra.mxu0 %v715
  %845 = vmatprep.mubr.bf16.mxu0 %v413
  %846 = vmatmul.mubr.bf16.gmra.mrb[0].mxu0 %v412
  %v847 = vpop.f32.mrb[0].mxu0
  %v848 = vadd.f32 %v486, %v847
  %v849 = vpop.f32.mrb[0].mxu0
  %v850 = vadd.f32 %v490, %v849
  %v851 = vpop.f32.mrb[0].mxu0
  %v852 = vpop.f32.mrb[0].mxu0
  %853 = vdwg.mxu0
  %854 = vmatprep.subr.bf16.mxu0 %v718
  %855 = vmatpush1.bf16.msra.mxu0 %v717
  %856 = vmatprep.subr.bf16.mxu0 %v720
  %857 = vmatpush1.bf16.msra.mxu0 %v719
  %858 = vmatprep.subr.bf16.mxu0 %v722
  %859 = vmatpush1.bf16.msra.mxu0 %v721
  %860 = vmatprep.subr.bf16.mxu0 %v724
  %861 = vmatpush1.bf16.msra.mxu0 %v723
  %862 = vmatprep.subr.bf16.mxu0 %v726
  %863 = vmatpush1.bf16.msra.mxu0 %v725
  %864 = vmatprep.subr.bf16.mxu0 %v728
  %865 = vmatpush1.bf16.msra.mxu0 %v727
  %866 = vmatprep.subr.bf16.mxu0 %v730
  %867 = vmatpush1.bf16.msra.mxu0 %v729
  %868 = vmatprep.subr.bf16.mxu0 %v732
  %869 = vmatpush1.bf16.msra.mxu0 %v731
  %870 = vmatprep.subr.bf16.mxu0 %v734
  %871 = vmatpush1.bf16.msra.mxu0 %v733
  %872 = vmatprep.subr.bf16.mxu0 %v736
  %873 = vmatpush1.bf16.msra.mxu0 %v735
  %874 = vmatprep.subr.bf16.mxu0 %v738
  %875 = vmatpush1.bf16.msra.mxu0 %v737
  %876 = vmatprep.subr.bf16.mxu0 %v740
  %877 = vmatpush1.bf16.msra.mxu0 %v739
  %878 = vmatprep.subr.bf16.mxu0 %v742
  %879 = vmatpush1.bf16.msra.mxu0 %v741
  %880 = vmatprep.subr.bf16.mxu0 %v744
  %881 = vmatpush1.bf16.msra.mxu0 %v743
  %882 = vmatprep.subr.bf16.mxu0 %v746
  %883 = vmatpush1.bf16.msra.mxu0 %v745
  %884 = vmatprep.subr.bf16.mxu0 %v748
  %885 = vmatpush1.bf16.msra.mxu0 %v747
  %886 = vmatprep.mubr.bf16.mxu0 %v415
  %887 = vmatmul.mubr.bf16.gmra.mrb[0].mxu0 %v414
  %v888 = vpop.f32.mrb[0].mxu0
  %v889 = vadd.f32 %v848, %v888
  %v890 = vpop.f32.mrb[0].mxu0
  %v891 = vadd.f32 %v850, %v890
  %v892 = vpop.f32.mrb[0].mxu0
  %v893 = vpop.f32.mrb[0].mxu0
  %894 = vdwg.mxu0
  %v895 = vmax.f32 %v889, 0.0
  %v896 = vmax.f32 %v891, 0.0
  %v897 = vpack.c.bf16 %v895, %v895
  %v898 = vpack.c.bf16 %v896, %v896
  %v899 = vld [vmem:[%s3] sm:$0xf]
  %v900 = vld [vmem:[%s3 + $0x4] sm:$0xf]
  %v901 = vld [vmem:[%s3 + $0x8] sm:$0xf]
  %v902 = vld [vmem:[%s3 + $0xc] sm:$0xf]
  %v903 = vld [vmem:[%s3 + $0x10] sm:$0xf]
  %v904 = vld [vmem:[%s3 + $0x14] sm:$0xf]
  %v905 = vld [vmem:[%s3 + $0x18] sm:$0xf]
  %v906 = vld [vmem:[%s3 + $0x1c] sm:$0xf]
  %v907 = vld [vmem:[%s3 + $0x20] sm:$0xf]
  %v908 = vld [vmem:[%s3 + $0x24] sm:$0xf]
  %v909 = vld [vmem:[%s3 + $0x28] sm:$0xf]
  %v910 = vld [vmem:[%s3 + $0x2c] sm:$0xf]
  %v911 = vld [vmem:[%s3 + $0x30] sm:$0xf]
  %v912 = vld [vmem:[%s3 + $0x34] sm:$0xf]
  %v913 = vld [vmem:[%s3 + $0x38] sm:$0xf]
  %v914 = vld [vmem:[%s3 + $0x3c] sm:$0xf]
  %v915 = vld [vmem:[%s3 + $0x40] sm:$0xf]
  %v916 = vld [vmem:[%s3 + $0x44] sm:$0xf]
  %v917 = vld [vmem:[%s3 + $0x48] sm:$0xf]
  %v918 = vld [vmem:[%s3 + $0x4c] sm:$0xf]
  %v919 = vld [vmem:[%s3 + $0x50] sm:$0xf]
  %v920 = vld [vmem:[%s3 + $0x54] sm:$0xf]
  %v921 = vld [vmem:[%s3 + $0x58] sm:$0xf]
  %v922 = vld [vmem:[%s3 + $0x5c] sm:$0xf]
  %v923 = vld [vmem:[%s3 + $0x60] sm:$0xf]
  %v924 = vld [vmem:[%s3 + $0x64] sm:$0xf]
  %v925 = vld [vmem:[%s3 + $0x68] sm:$0xf]
  %v926 = vld [vmem:[%s3 + $0x6c] sm:$0xf]
  %v927 = vld [vmem:[%s3 + $0x70] sm:$0xf]
  %v928 = vld [vmem:[%s3 + $0x74] sm:$0xf]
  %v929 = vld [vmem:[%s3 + $0x78] sm:$0xf]
  %v930 = vld [vmem:[%s3 + $0x7c] sm:$0xf]
  %v931 = vld [vmem:[%s7 + $0x4] ss:$0 sm:$0xff]
  %v964 = vunpack.c.l.b16 %v899
  %v965 = vunpack.c.l.b16 %v900
  %v966 = vunpack.c.l.b16 %v901
  %v967 = vunpack.c.l.b16 %v902
  %v968 = vunpack.c.l.b16 %v903
  %v969 = vunpack.c.l.b16 %v904
  %v970 = vunpack.c.l.b16 %v905
  %v971 = vunpack.c.l.b16 %v906
  %v972 = vunpack.c.l.b16 %v907
  %v973 = vunpack.c.l.b16 %v908
  %v974 = vunpack.c.l.b16 %v909
  %v975 = vunpack.c.l.b16 %v910
  %v976 = vunpack.c.l.b16 %v911
  %v977 = vunpack.c.l.b16 %v912
  %v978 = vunpack.c.l.b16 %v913
  %v979 = vunpack.c.l.b16 %v914
  %v980 = vunpack.c.l.b16 %v915
  %v981 = vunpack.c.l.b16 %v916
  %v982 = vunpack.c.l.b16 %v917
  %v983 = vunpack.c.l.b16 %v918
  %v984 = vunpack.c.l.b16 %v919
  %v985 = vunpack.c.l.b16 %v920
  %v986 = vunpack.c.l.b16 %v921
  %v987 = vunpack.c.l.b16 %v922
  %v988 = vunpack.c.l.b16 %v923
  %v989 = vunpack.c.l.b16 %v924
  %v990 = vunpack.c.l.b16 %v925
  %v991 = vunpack.c.l.b16 %v926
  %v992 = vunpack.c.l.b16 %v927
  %v993 = vunpack.c.l.b16 %v928
  %v994 = vunpack.c.l.b16 %v929
  %v995 = vunpack.c.l.b16 %v930
  %v996 = vpack.c.b16 %v965, %v964
  %v997 = vpack.c.b16 %v967, %v966
  %v998 = vpack.c.b16 %v969, %v968
  %v999 = vpack.c.b16 %v971, %v970
  %v1000 = vpack.c.b16 %v973, %v972
  %v1001 = vpack.c.b16 %v975, %v974
  %v1002 = vpack.c.b16 %v977, %v976
  %v1003 = vpack.c.b16 %v979, %v978
  %v1004 = vpack.c.b16 %v981, %v980
  %v1005 = vpack.c.b16 %v983, %v982
  %v1006 = vpack.c.b16 %v985, %v984
  %v1007 = vpack.c.b16 %v987, %v986
  %v1008 = vpack.c.b16 %v989, %v988
  %v1009 = vpack.c.b16 %v991, %v990
  %v1010 = vpack.c.b16 %v993, %v992
  %v1011 = vpack.c.b16 %v995, %v994
  %1028 = vmatprep.subr.bf16.mxu0 0
  %1029 = vmatpush1.bf16.msra.mxu0 %v996
  %1030 = vmatprep.subr.bf16.mxu0 0
  %1031 = vmatpush1.bf16.msra.mxu0 %v997
  %1032 = vmatprep.subr.bf16.mxu0 0
  %1033 = vmatpush1.bf16.msra.mxu0 %v998
  %1034 = vmatprep.subr.bf16.mxu0 0
  %1035 = vmatpush1.bf16.msra.mxu0 %v999
  %1036 = vmatprep.subr.bf16.mxu0 0
  %1037 = vmatpush1.bf16.msra.mxu0 %v1000
  %1038 = vmatprep.subr.bf16.mxu0 0
  %1039 = vmatpush1.bf16.msra.mxu0 %v1001
  %1040 = vmatprep.subr.bf16.mxu0 0
  %1041 = vmatpush1.bf16.msra.mxu0 %v1002
  %1042 = vmatprep.subr.bf16.mxu0 0
  %1043 = vmatpush1.bf16.msra.mxu0 %v1003
  %1044 = vmatprep.subr.bf16.mxu0 0
  %1045 = vmatpush1.bf16.msra.mxu0 %v1004
  %1046 = vmatprep.subr.bf16.mxu0 0
  %1047 = vmatpush1.bf16.msra.mxu0 %v1005
  %1048 = vmatprep.subr.bf16.mxu0 0
  %1049 = vmatpush1.bf16.msra.mxu0 %v1006
  %1050 = vmatprep.subr.bf16.mxu0 0
  %1051 = vmatpush1.bf16.msra.mxu0 %v1007
  %1052 = vmatprep.subr.bf16.mxu0 0
  %1053 = vmatpush1.bf16.msra.mxu0 %v1008
  %1054 = vmatprep.subr.bf16.mxu0 0
  %1055 = vmatpush1.bf16.msra.mxu0 %v1009
  %1056 = vmatprep.subr.bf16.mxu0 0
  %1057 = vmatpush1.bf16.msra.mxu0 %v1010
  %1058 = vmatprep.subr.bf16.mxu0 0
  %1059 = vmatpush1.bf16.msra.mxu0 %v1011
  %1060 = vmatprep.mubr.bf16.mxu0 %v898
  %1061 = vmatmul.mubr.bf16.gmra.mrb[0].mxu0 %v897
  %v1062 = vpop.f32.mrb[0].mxu0
  %v1063 = vadd.f32 %v931, %v1062
  %v1064 = vpop.f32.mrb[0].mxu0
  %v1065 = vpop.f32.mrb[0].mxu0
  %v1066 = vpop.f32.mrb[0].mxu0
  %1067 = vdwg.mxu0
  %v1068 = vmax.f32 %v1063, 0.0
  %v1069 = vpack.c.bf16 %v1068, %v1068
  %v1070 = vld [vmem:[%s4] sm:$0xf]
  %v1071 = vld [vmem:[%s4 + $0x4] sm:$0xf]
  %v1072 = vld [vmem:[%s4 + $0x8] sm:$0xf]
  %v1073 = vld [vmem:[%s4 + $0xc] sm:$0xf]
  %v1074 = vld [vmem:[%s4 + $0x10] sm:$0xf]
  %v1075 = vld [vmem:[%s4 + $0x14] sm:$0xf]
  %v1076 = vld [vmem:[%s4 + $0x18] sm:$0xf]
  %v1077 = vld [vmem:[%s4 + $0x1c] sm:$0xf]
  %v1078 = vld [vmem:[%s4 + $0x20] sm:$0xf]
  %v1079 = vld [vmem:[%s4 + $0x24] sm:$0xf]
  %v1080 = vld [vmem:[%s4 + $0x28] sm:$0xf]
  %v1081 = vld [vmem:[%s4 + $0x2c] sm:$0xf]
  %v1082 = vld [vmem:[%s4 + $0x30] sm:$0xf]
  %v1083 = vld [vmem:[%s4 + $0x34] sm:$0xf]
  %v1084 = vld [vmem:[%s4 + $0x38] sm:$0xf]
  %v1085 = vld [vmem:[%s4 + $0x3c] sm:$0xf]
  %v1086 = vld [vmem:[%s7 + $0x5] ss:$0 sm:$0xff]
  %v1103 = vunpack.c.l.b16 %v1070
  %v1104 = vunpack.c.l.b16 %v1071
  %v1105 = vunpack.c.l.b16 %v1072
  %v1106 = vunpack.c.l.b16 %v1073
  %v1107 = vunpack.c.l.b16 %v1074
  %v1108 = vunpack.c.l.b16 %v1075
  %v1109 = vunpack.c.l.b16 %v1076
  %v1110 = vunpack.c.l.b16 %v1077
  %v1111 = vunpack.c.l.b16 %v1078
  %v1112 = vunpack.c.l.b16 %v1079
  %v1113 = vunpack.c.l.b16 %v1080
  %v1114 = vunpack.c.l.b16 %v1081
  %v1115 = vunpack.c.l.b16 %v1082
  %v1116 = vunpack.c.l.b16 %v1083
  %v1117 = vunpack.c.l.b16 %v1084
  %v1118 = vunpack.c.l.b16 %v1085
  %v1119 = vpack.c.b16 %v1104, %v1103
  %v1120 = vpack.c.b16 %v1106, %v1105
  %v1121 = vpack.c.b16 %v1108, %v1107
  %v1122 = vpack.c.b16 %v1110, %v1109
  %v1123 = vpack.c.b16 %v1112, %v1111
  %v1124 = vpack.c.b16 %v1114, %v1113
  %v1125 = vpack.c.b16 %v1116, %v1115
  %v1126 = vpack.c.b16 %v1118, %v1117
  %1135 = vmatprep.subr.bf16.mxu0 0
  %1136 = vmatpush1.bf16.msra.mxu0 %v1119
  %1137 = vmatprep.subr.bf16.mxu0 0
  %1138 = vmatpush1.bf16.msra.mxu0 %v1120
  %1139 = vmatprep.subr.bf16.mxu0 0
  %1140 = vmatpush1.bf16.msra.mxu0 %v1121
  %1141 = vmatprep.subr.bf16.mxu0 0
  %1142 = vmatpush1.bf16.msra.mxu0 %v1122
  %1143 = vmatprep.subr.bf16.mxu0 0
  %1144 = vmatpush1.bf16.msra.mxu0 %v1123
  %1145 = vmatprep.subr.bf16.mxu0 0
  %1146 = vmatpush1.bf16.msra.mxu0 %v1124
  %1147 = vmatprep.subr.bf16.mxu0 0
  %1148 = vmatpush1.bf16.msra.mxu0 %v1125
  %1149 = vmatprep.subr.bf16.mxu0 0
  %1150 = vmatpush1.bf16.msra.mxu0 %v1126
  %1151 = vmatprep.subr.bf16.mxu0 0
  %1152 = vmatpush1.bf16.msra.mxu0 0
  %1153 = vmatprep.subr.bf16.mxu0 0
  %1154 = vmatpush1.bf16.msra.mxu0 0
  %1155 = vmatprep.subr.bf16.mxu0 0
  %1156 = vmatpush1.bf16.msra.mxu0 0
  %1157 = vmatprep.subr.bf16.mxu0 0
  %1158 = vmatpush1.bf16.msra.mxu0 0
  %1159 = vmatprep.subr.bf16.mxu0 0
  %1160 = vmatpush1.bf16.msra.mxu0 0
  %1161 = vmatprep.subr.bf16.mxu0 0
  %1162 = vmatpush1.bf16.msra.mxu0 0
  %1163 = vmatprep.subr.bf16.mxu0 0
  %1164 = vmatpush1.bf16.msra.mxu0 0
  %1165 = vmatprep.subr.bf16.mxu0 0
  %1166 = vmatpush1.bf16.msra.mxu0 0
  %1167 = vmatprep.mubr.bf16.mxu0 0
  %1168 = vmatmul.mubr.bf16.gmra.mrb[0].mxu0 %v1069
  %v1169 = vpop.f32.mrb[0].mxu0
  %v1170 = vadd.f32 %v1086, %v1169
  %v1171 = vpop.f32.mrb[0].mxu0
  %v1172 = vpop.f32.mrb[0].mxu0
  %v1173 = vpop.f32.mrb[0].mxu0
  %1174 = vdwg.mxu0
  %v1175 = vmax.f32 %v1170, 0.0
  %v1176 = vpack.c.bf16 %v1175, %v1175
  %v1177 = vld [vmem:[%s5] sm:$0xf]
  %v1178 = vld [vmem:[%s5 + $0x4] sm:$0xf]
  %v1179 = vld [vmem:[%s5 + $0x8] sm:$0xf]
  %v1180 = vld [vmem:[%s5 + $0xc] sm:$0xf]
  %v1181 = vld [vmem:[%s5 + $0x10] sm:$0xf]
  %v1182 = vld [vmem:[%s5 + $0x14] sm:$0xf]
  %v1183 = vld [vmem:[%s5 + $0x18] sm:$0xf]
  %v1184 = vld [vmem:[%s5 + $0x1c] sm:$0xf]
  %v1185 = vld [vmem:[%s7 + $0x6] ss:$0 sm:$0xff]
  %v1194 = vunpack.c.l.b16 %v1177
  %v1195 = vunpack.c.l.b16 %v1178
  %v1196 = vunpack.c.l.b16 %v1179
  %v1197 = vunpack.c.l.b16 %v1180
  %v1198 = vunpack.c.l.b16 %v1181
  %v1199 = vunpack.c.l.b16 %v1182
  %v1200 = vunpack.c.l.b16 %v1183
  %v1201 = vunpack.c.l.b16 %v1184
  %v1202 = vpack.c.b16 %v1195, %v1194
  %v1203 = vpack.c.b16 %v1197, %v1196
  %v1204 = vpack.c.b16 %v1199, %v1198
  %v1205 = vpack.c.b16 %v1201, %v1200
  %vm1210 = vcmask 523264
  %v1212 = vsel %vm1210, %v1176, 0
  %1214 = vmatprep.subr.bf16.mxu0 0
  %1215 = vmatpush1.bf16.msra.mxu0 %v1202
  %1216 = vmatprep.subr.bf16.mxu0 0
  %1217 = vmatpush1.bf16.msra.mxu0 %v1203
  %1218 = vmatprep.subr.bf16.mxu0 0
  %1219 = vmatpush1.bf16.msra.mxu0 %v1204
  %1220 = vmatprep.subr.bf16.mxu0 0
  %1221 = vmatpush1.bf16.msra.mxu0 %v1205
  %1222 = vmatprep.subr.bf16.mxu0 0
  %1223 = vmatpush1.bf16.msra.mxu0 0
  %1224 = vmatprep.subr.bf16.mxu0 0
  %1225 = vmatpush1.bf16.msra.mxu0 0
  %1226 = vmatprep.subr.bf16.mxu0 0
  %1227 = vmatpush1.bf16.msra.mxu0 0
  %1228 = vmatprep.subr.bf16.mxu0 0
  %1229 = vmatpush1.bf16.msra.mxu0 0
  %1230 = vmatprep.subr.bf16.mxu0 0
  %1231 = vmatpush1.bf16.msra.mxu0 0
  %1232 = vmatprep.subr.bf16.mxu0 0
  %1233 = vmatpush1.bf16.msra.mxu0 0
  %1234 = vmatprep.subr.bf16.mxu0 0
  %1235 = vmatpush1.bf16.msra.mxu0 0
  %1236 = vmatprep.subr.bf16.mxu0 0
  %1237 = vmatpush1.bf16.msra.mxu0 0
  %1238 = vmatprep.subr.bf16.mxu0 0
  %1239 = vmatpush1.bf16.msra.mxu0 0
  %1240 = vmatprep.subr.bf16.mxu0 0
  %1241 = vmatpush1.bf16.msra.mxu0 0
  %1242 = vmatprep.subr.bf16.mxu0 0
  %1243 = vmatpush1.bf16.msra.mxu0 0
  %1244 = vmatprep.subr.bf16.mxu0 0
  %1245 = vmatpush1.bf16.msra.mxu0 0
  %1246 = vmatprep.mubr.bf16.mxu0 0
  %1247 = vmatmul.mubr.bf16.gmra.mrb[0].mxu0 %v1212
  %v1248 = vpop.f32.mrb[0].mxu0
  %v1249 = vadd.f32 %v1185, %v1248
  %v1250 = vpop.f32.mrb[0].mxu0
  %v1251 = vpop.f32.mrb[0].mxu0
  %v1252 = vpop.f32.mrb[0].mxu0
  %1253 = vdwg.mxu0
  %v1254 = vmax.f32 %v1249, 0.0
  %v1255 = vpack.c.bf16 %v1254, %v1254
  %v1256 = vld [vmem:[%s6] sm:$0xf]
  %v1257 = vld [vmem:[%s6 + $0x4] sm:$0xf]
  %v1258 = vld [vmem:[%s6 + $0x8] sm:$0xf]
  %v1259 = vld [vmem:[%s6 + $0xc] sm:$0xf]
  %v1260 = vld [vmem:[%s7 + $0x7] ss:$0 sm:$0xff]
  %v1265 = vunpack.c.l.b16 %v1256
  %v1266 = vunpack.c.l.b16 %v1257
  %v1267 = vunpack.c.l.b16 %v1258
  %v1268 = vunpack.c.l.b16 %v1259
  %v1269 = vpack.c.b16 %v1266, %v1265
  %v1270 = vpack.c.b16 %v1268, %v1267
  %vm1273 = vcmask 261120
  %v1275 = vsel %vm1273, %v1255, 0
  %1277 = vmatprep.subr.bf16.mxu0 0
  %1278 = vmatpush1.bf16.msra.mxu0 %v1269
  %1279 = vmatprep.subr.bf16.mxu0 0
  %1280 = vmatpush1.bf16.msra.mxu0 %v1270
  %1281 = vmatprep.subr.bf16.mxu0 0
  %1282 = vmatpush1.bf16.msra.mxu0 0
  %1283 = vmatprep.subr.bf16.mxu0 0
  %1284 = vmatpush1.bf16.msra.mxu0 0
  %1285 = vmatprep.subr.bf16.mxu0 0
  %1286 = vmatpush1.bf16.msra.mxu0 0
  %1287 = vmatprep.subr.bf16.mxu0 0
  %1288 = vmatpush1.bf16.msra.mxu0 0
  %1289 = vmatprep.subr.bf16.mxu0 0
  %1290 = vmatpush1.bf16.msra.mxu0 0
  %1291 = vmatprep.subr.bf16.mxu0 0
  %1292 = vmatpush1.bf16.msra.mxu0 0
  %1293 = vmatprep.subr.bf16.mxu0 0
  %1294 = vmatpush1.bf16.msra.mxu0 0
  %1295 = vmatprep.subr.bf16.mxu0 0
  %1296 = vmatpush1.bf16.msra.mxu0 0
  %1297 = vmatprep.subr.bf16.mxu0 0
  %1298 = vmatpush1.bf16.msra.mxu0 0
  %1299 = vmatprep.subr.bf16.mxu0 0
  %1300 = vmatpush1.bf16.msra.mxu0 0
  %1301 = vmatprep.subr.bf16.mxu0 0
  %1302 = vmatpush1.bf16.msra.mxu0 0
  %1303 = vmatprep.subr.bf16.mxu0 0
  %1304 = vmatpush1.bf16.msra.mxu0 0
  %1305 = vmatprep.subr.bf16.mxu0 0
  %1306 = vmatpush1.bf16.msra.mxu0 0
  %1307 = vmatprep.subr.bf16.mxu0 0
  %1308 = vmatpush1.bf16.msra.mxu0 0
  %1309 = vmatprep.mubr.bf16.mxu0 0
  %1310 = vmatmul.mubr.bf16.gmra.mrb[0].mxu0 %v1275
  %v1311 = vpop.f32.mrb[0].mxu0
  %v1312 = vadd.f32 %v1260, %v1311
  %v1313 = vpop.f32.mrb[0].mxu0
  %v1314 = vpop.f32.mrb[0].mxu0
  %v1315 = vpop.f32.mrb[0].mxu0
  %1316 = vdwg.mxu0
  %1317 = vmax.xlane.f32.xlu0 %v1312
  %v1318 = vpop.xlane.xlu0 %1317
  %v1319 = vsub.f32 %v1312, %v1318
  %v1320 = vmul.f32 %v1319, 1.442695
  %v1321 = vpow.pop %v1320
  %1322 = vadd.xlane.f32.xlu0 %v1321
  %v1323 = vpop.xlane.xlu0 %1322
  %v1324 = vrcp.pop %v1323
  %v1325 = vmul.f32 %v1321, %v1324
  %1326 = vst [vmem:[%s8] sm:$0xff] %v1325
  %1327 = vst [vmem:[%s8 + $0x8] sm:$0xff] %v1312
  // Predicated region
  $region34: #{scgraph_forward.1} parent=0 // pred_check
    _
  $region35: #{scgraph_forward.1} parent=0 // pred_check_branch
    %1329 = sbr.rel (0) target = $region37
  $region36: #{scgraph_forward.1} parent=0 // pred_region
    _
  $region37: #{scgraph_forward.1} parent=0 // pred_fallthru
    _
  // Predicated region
  $region38: #{scgraph_forward.1} parent=0 // pred_check
    _
  $region39: #{scgraph_forward.1} parent=0 // pred_check_branch
    %1331 = sbr.rel (0) target = $region41
  $region40: #{scgraph_forward.1} parent=0 // pred_region
    _
  $region41: #{scgraph_forward.1} parent=0 // pred_fallthru
    _

</llo_original>
